<compile_context>
chip_gen: v6e
topology: v6e:2x2x1
jax: 0.10.0
libtpu: 0.0.40
codegen_flags: <defaults>
</compile_context>

<pallas_src>
import functools
import math

import jax
import jax.numpy as jnp
from jax.experimental import pallas as pl
from jax.experimental.pallas import tpu as pltpu


# --------------------------------------------------------------------------
# Fused kernel: QKV projection + per-channel temporal attention, Bb batches/step
# --------------------------------------------------------------------------
def _fused_temporal_attention_kernel(x_ref, wqkv_ref, bqkv_ref, o_ref,
                                     *, Bb, T, N, C):
    """One grid step processes Bb batch elements.

    x_ref    : (Bb, T*N, F_in)  inputs, channels on lanes
    wqkv_ref : (F_in, 3*C)      fused [Wq*scale | Wk | Wv]
    bqkv_ref : (1, 3*C)         fused [bq*scale | bk | bv]
    o_ref    : (Bb, C, T*N)     channel-major, lane-dense output
    """
    F_in = x_ref.shape[-1]
    x2d = x_ref[...].reshape(Bb * T * N, F_in)

    # Single fused QKV projection on the MXU.
    qkv = jnp.dot(x2d, wqkv_ref[...], preferred_element_type=jnp.float32)
    qkv = (qkv + bqkv_ref[...]).reshape(Bb, T, N, 3 * C)

    q = qkv[..., 0 * C:1 * C]   # 1/sqrt(dim_per_head) already folded into Wq/bq
    k = qkv[..., 1 * C:2 * C]
    v = qkv[..., 2 * C:3 * C]

    # Per-channel temporal attention, fully vectorized over (batch, tq, tk).
    # Channels stay on the lane axis; the contraction over N is a sublane reduce.
    #   s[b, tq, tk, c] = sum_n q[b, tq, n, c] * k[b, tk, n, c]
    s = jnp.sum(q[:, :, None, :, :] * k[:, None, :, :, :], axis=3)   # (Bb, T, T, C)

    # Softmax over the key axis (tk), exact reciprocal (tiny denominator count).
    m = jnp.max(s, axis=2, keepdims=True)                            # (Bb, T, 1, C)
    p = jnp.exp(s - m)
    p = p / jnp.sum(p, axis=2, keepdims=True)

    #   out[b, tq, n, c] = sum_tk p[b, tq, tk, c] * v[b, tk, n, c]
    o = jnp.sum(p[:, :, :, None, :] * v[:, None, :, :, :], axis=2)   # (Bb, T, N, C)

    # Channel-major, lane-dense store: (Bb, T*N, C) -> (Bb, C, T*N). The transpose
    # runs on the otherwise-idle XLU and the 128-wide last dim gives unmasked vst,
    # removing the wrapper's output permute entirely.
    o = jnp.transpose(o.reshape(Bb, T * N, C), (0, 2, 1))
    o_ref[...] = o.astype(o_ref.dtype)


# --------------------------------------------------------------------------
# Module wrapper
# --------------------------------------------------------------------------
def temporal_attention_layer(x, wq, bq, wk, bk, wv, bv, num_heads=8,
                             batch_block=None):
    """x: (B, T, N, F_in) -> (B, F_in, T, N)   (matches the PyTorch forward, eval mode).

    wq/wk/wv: (F_in, F_in) dense equivalents of the 1x1 conv weights
              (w[i, o] == conv.weight[o, i, 0, 0]); bq/bk/bv: (F_in,).
    """
    B, T, N, F_in = x.shape
    C = F_in
    dim_per_head = F_in // num_heads
    scale = 1.0 / math.sqrt(dim_per_head)
    f32 = jnp.float32

    # Fuse the three 1x1-conv projections into one (F_in, 3C) weight / (1, 3C) bias;
    # fold the attention scale into the query weight AND bias.
    wqkv = jnp.concatenate([wq * scale, wk, wv], axis=1).astype(f32)          # (F_in, 3C)
    bqkv = jnp.concatenate([bq * scale, bk, bv], axis=0).astype(f32)[None, :] # (1, 3C)

    # Batch blocking: a few big grid steps instead of one tiny step per batch.
    if batch_block is None:
        # >= 2 grid steps keeps both v7x TensorCores busy; cap the block so the
        # x/out blocks (double-buffered) + in-kernel intermediates stay well under
        # v5e's 16 MiB default scoped VMEM (no vmem_limit_bytes override needed).
        per_batch_bytes = 4 * T * N * (F_in + C) * 2 + 4 * T * T * N * C * 2
        vmem_cap = max(1, (8 << 20) // max(per_batch_bytes, 1))
        batch_block = max(1, min(B // 2 if B >= 2 else 1, vmem_cap))
    G = pl.cdiv(B, batch_block)
    B_pad = G * batch_block

    x3 = x.reshape(B, T * N, F_in).astype(f32)   # free reshape, native layout
    if B_pad != B:
        x3 = jnp.pad(x3, ((0, B_pad - B), (0, 0), (0, 0)))

    kernel = functools.partial(_fused_temporal_attention_kernel,
                               Bb=batch_block, T=T, N=N, C=C)

    out_ctn = pl.pallas_call(
        kernel,
        out_shape=jax.ShapeDtypeStruct((B_pad, C, T * N), f32),
        grid=(G,),
        in_specs=[
            pl.BlockSpec((batch_block, T * N, F_in), lambda g: (g, 0, 0)),
            pl.BlockSpec((F_in, 3 * C), lambda g: (0, 0)),
            pl.BlockSpec((1, 3 * C), lambda g: (0, 0)),
        ],
        out_specs=pl.BlockSpec((batch_block, C, T * N), lambda g: (g, 0, 0)),
        compiler_params=pltpu.CompilerParams(
            dimension_semantics=("parallel",)),
    )(x3, wqkv, bqkv)

    # (B, C, T*N) -> (B, F_in, T, N): free reshape only (no transpose, no extra HBM pass).
    out = out_ctn[:B].reshape(B, C, T, N)
    # Dropout(p=0.3): identity in eval/inference mode.
    # TODO(synk): training-mode stochastic dropout (pltpu.prng_seed/prng_random_bits).
    return out


# --------------------------------------------------------------------------
# Literal-translation pure-JAX reference (mirrors the PyTorch ops exactly)
# --------------------------------------------------------------------------
def reference_forward(x, wq, bq, wk, bk, wv, bv, num_heads=8):
    B, T, N, F_in = x.shape
    dph = F_in // num_heads
    xp = jnp.transpose(x, (0, 3, 1, 2))                      # (B, F_in, T, N)

    def conv1x1(a, w, b):
        return jnp.einsum("bitn,io->botn", a, w) + b[None, :, None, None]

    q = conv1x1(xp, wq, bq)
    k = conv1x1(xp, wk, bk)
    v = conv1x1(xp, wv, bv)

    def split_cat(a):  # torch.cat(torch.split(a, num_heads, dim=1), dim=0)
        chunks = jnp.split(a, a.shape[1] // num_heads, axis=1)
        return jnp.concatenate(chunks, axis=0)

    q, k, v = split_cat(q), split_cat(k), split_cat(v)
    att = jnp.einsum("bhtn,bhsn->bhts", q, k) / (dph ** 0.5)
    att = jax.nn.softmax(att, axis=-1)
    X = jnp.einsum("bhts,bhsn->bhtn", att, v)
    chunks = jnp.split(X, X.shape[0] // B, axis=0)
    return jnp.concatenate(chunks, axis=1)                   # (B, F_in, T, N)


if __name__ == "__main__":
    # Small shapes consistent with the module: (B, T, N, F_in)
    B, T, N, F_in = 2, 8, 16, 32
    num_heads = 8

    key = jax.random.PRNGKey(0)
    kx, kwq, kbq, kwk, kbk, kwv, kbv = jax.random.split(key, 7)

    x = jax.random.normal(kx, (B, T, N, F_in), dtype=jnp.float32)
    s = 1.0 / math.sqrt(F_in)
    wq = jax.random.uniform(kwq, (F_in, F_in), minval=-s, maxval=s)
    wk = jax.random.uniform(kwk, (F_in, F_in), minval=-s, maxval=s)
    wv = jax.random.uniform(kwv, (F_in, F_in), minval=-s, maxval=s)
    bq = jax.random.uniform(kbq, (F_in,), minval=-s, maxval=s)
    bk = jax.random.uniform(kbk, (F_in,), minval=-s, maxval=s)
    bv = jax.random.uniform(kbv, (F_in,), minval=-s, maxval=s)

    out = temporal_attention_layer(x, wq, bq, wk, bk, wv, bv, num_heads)
    out = jax.block_until_ready(out)

    ref = reference_forward(x, wq, bq, wk, bk, wv, bv, num_heads)
    assert out.shape == (B, F_in, T, N), out.shape
    # f32-tight again (softmax reciprocal is exact now); the small residual budget
    # covers MXU multi-pass f32 matmul vs XLA einsum accumulation-order differences.
    assert jnp.allclose(out, ref, rtol=5e-4, atol=5e-4), (
        float(jnp.max(jnp.abs(out - ref))))

    print("KERNEL_OK")
</pallas_src>

<mosaic_0001>
module attributes {stable_mosaic.version = 11 : i64} {
  func.func @_fused_temporal_attention_kernel(%arg0: i32, %arg1: memref<1x128x32xf32, #tpu.memory_space<vmem>>, %arg2: memref<32x96xf32, #tpu.memory_space<vmem>>, %arg3: memref<1x96xf32, #tpu.memory_space<vmem>>, %arg4: memref<1x32x128xf32, #tpu.memory_space<vmem>>) attributes {dimension_semantics = [#tpu.dimension_semantics<parallel>], iteration_bounds = array<i64: 2>, scalar_prefetch = 0 : i64, scratch_operands = 0 : i64, tpu.core_type = #tpu.core_type<tc>, window_params = [{transform_indices = @transform_0, window_bounds = array<i64: 1, 128, 32>}, {pipeline_mode = #tpu.pipeline_mode<synchronous>, transform_indices = @transform_1, window_bounds = array<i64: 32, 96>}, {pipeline_mode = #tpu.pipeline_mode<synchronous>, transform_indices = @transform_2, window_bounds = array<i64: 1, 96>}, {transform_indices = @transform_3, window_bounds = array<i64: 1, 32, 128>}]} {
    %c0 = arith.constant 0 : index
    %c0_0 = arith.constant 0 : index
    %c0_1 = arith.constant 0 : index
    %0 = vector.load %arg1[%c0, %c0_0, %c0_1] : memref<1x128x32xf32, #tpu.memory_space<vmem>>, vector<1x128x32xf32>
    %1 = vector.shape_cast %0 : vector<1x128x32xf32> to vector<128x32xf32>
    %c0_2 = arith.constant 0 : index
    %c0_3 = arith.constant 0 : index
    %2 = vector.load %arg2[%c0_2, %c0_3] : memref<32x96xf32, #tpu.memory_space<vmem>>, vector<32x96xf32>
    %cst = arith.constant dense<0.000000e+00> : vector<128x96xf32>
    %3 = tpu.matmul %1, %2, %cst {dimension_numbers = #tpu.dot_dimension_numbers<[1], [0], [0], [1], [0, 0, 1, 1], [], []>} : vector<128x32xf32>, vector<32x96xf32>, vector<128x96xf32> -> vector<128x96xf32>
    %c0_4 = arith.constant 0 : index
    %c0_5 = arith.constant 0 : index
    %4 = vector.load %arg3[%c0_4, %c0_5] : memref<1x96xf32, #tpu.memory_space<vmem>>, vector<1x96xf32>
    %5 = vector.broadcast %4 : vector<1x96xf32> to vector<128x96xf32>
    %6 = arith.addf %3, %5 : vector<128x96xf32>
    %7 = vector.shape_cast %6 : vector<128x96xf32> to vector<1x8x16x96xf32>
    %8 = vector.extract_strided_slice %7 {offsets = [0, 0, 0, 0], sizes = [1, 8, 16, 32], strides = [1, 1, 1, 1]} : vector<1x8x16x96xf32> to vector<1x8x16x32xf32>
    %9 = vector.extract_strided_slice %7 {offsets = [0, 0, 0, 32], sizes = [1, 8, 16, 32], strides = [1, 1, 1, 1]} : vector<1x8x16x96xf32> to vector<1x8x16x32xf32>
    %10 = vector.extract_strided_slice %7 {offsets = [0, 0, 0, 64], sizes = [1, 8, 16, 32], strides = [1, 1, 1, 1]} : vector<1x8x16x96xf32> to vector<1x8x16x32xf32>
    %11 = vector.shape_cast %8 : vector<1x8x16x32xf32> to vector<1x8x1x16x32xf32>
    %12 = vector.shape_cast %9 : vector<1x8x16x32xf32> to vector<1x1x8x16x32xf32>
    %13 = vector.broadcast %11 : vector<1x8x1x16x32xf32> to vector<1x8x8x16x32xf32>
    %14 = vector.broadcast %12 : vector<1x1x8x16x32xf32> to vector<1x8x8x16x32xf32>
    %15 = arith.mulf %13, %14 : vector<1x8x8x16x32xf32>
    %cst_6 = arith.constant dense<0.000000e+00> : vector<1x8x8x32xf32>
    %16 = vector.multi_reduction <add>, %15, %cst_6 [3] : vector<1x8x8x16x32xf32> to vector<1x8x8x32xf32>
    %cst_7 = arith.constant dense<0xFF800000> : vector<1x8x32xf32>
    %17 = vector.multi_reduction <maximumf>, %16, %cst_7 [2] : vector<1x8x8x32xf32> to vector<1x8x32xf32>
    %18 = vector.shape_cast %17 : vector<1x8x32xf32> to vector<1x8x1x32xf32>
    %19 = vector.broadcast %18 : vector<1x8x1x32xf32> to vector<1x8x8x32xf32>
    %20 = arith.subf %16, %19 : vector<1x8x8x32xf32>
    %21 = math.exp %20 : vector<1x8x8x32xf32>
    %cst_8 = arith.constant dense<0.000000e+00> : vector<1x8x32xf32>
    %22 = vector.multi_reduction <add>, %21, %cst_8 [2] : vector<1x8x8x32xf32> to vector<1x8x32xf32>
    %23 = vector.shape_cast %22 : vector<1x8x32xf32> to vector<1x8x1x32xf32>
    %24 = vector.broadcast %23 : vector<1x8x1x32xf32> to vector<1x8x8x32xf32>
    %25 = arith.divf %21, %24 : vector<1x8x8x32xf32>
    %26 = vector.shape_cast %25 : vector<1x8x8x32xf32> to vector<1x8x8x1x32xf32>
    %27 = vector.shape_cast %10 : vector<1x8x16x32xf32> to vector<1x1x8x16x32xf32>
    %28 = vector.broadcast %26 : vector<1x8x8x1x32xf32> to vector<1x8x8x16x32xf32>
    %29 = vector.broadcast %27 : vector<1x1x8x16x32xf32> to vector<1x8x8x16x32xf32>
    %30 = arith.mulf %28, %29 : vector<1x8x8x16x32xf32>
    %cst_9 = arith.constant dense<0.000000e+00> : vector<1x8x16x32xf32>
    %31 = vector.multi_reduction <add>, %30, %cst_9 [2] : vector<1x8x8x16x32xf32> to vector<1x8x16x32xf32>
    %32 = vector.shape_cast %31 : vector<1x8x16x32xf32> to vector<1x128x32xf32>
    %33 = tpu.transpose %32, [0, 2, 1] : vector<1x128x32xf32> -> vector<1x32x128xf32>
    %c0_10 = arith.constant 0 : index
    %c0_11 = arith.constant 0 : index
    %c0_12 = arith.constant 0 : index
    %34 = vector.load %arg4[%c0_10, %c0_11, %c0_12] : memref<1x32x128xf32, #tpu.memory_space<vmem>>, vector<1x32x128xf32>
    tpu.vector_store %arg4[%c0_10, %c0_11, %c0_12], %33 {strides = array<i32>} : memref<1x32x128xf32, #tpu.memory_space<vmem>>, vector<1x32x128xf32>,
    return
  }
  func.func @transform_0(%arg0: i32) -> (i32, i32, i32) {
    %c0_i32 = arith.constant 0 : i32
    %c0_i32_0 = arith.constant 0 : i32
    %c0_i32_1 = arith.constant 0 : i32
    return %arg0, %c0_i32, %c0_i32_0 : i32, i32, i32
  }
  func.func @transform_1(%arg0: i32) -> (i32, i32) {
    %c0_i32 = arith.constant 0 : i32
    %c0_i32_0 = arith.constant 0 : i32
    %c0_i32_1 = arith.constant 0 : i32
    return %c0_i32, %c0_i32_0 : i32, i32
  }
  func.func @transform_2(%arg0: i32) -> (i32, i32) {
    %c0_i32 = arith.constant 0 : i32
    %c0_i32_0 = arith.constant 0 : i32
    %c0_i32_1 = arith.constant 0 : i32
    return %c0_i32, %c0_i32_0 : i32, i32
  }
  func.func @transform_3(%arg0: i32) -> (i32, i32, i32) {
    %c0_i32 = arith.constant 0 : i32
    %c0_i32_0 = arith.constant 0 : i32
    %c0_i32_1 = arith.constant 0 : i32
    return %arg0, %c0_i32, %c0_i32_0 : i32, i32, i32
  }
}

</mosaic_0001>

<llo_original>
// kernel: tpu_custom_call.1
$region0: #{tpu_custom_call.1}
  #allocation0 [shape = 'u32[]', space=smem, size = 0x4, offset = 0x4, fixed_abs, tag = 'smem constant byte address 0x4 - core index']
  #allocation1 [shape = 'u32[144,128]{1,0:T(1,128)}', space=vmem, size = 0x12000, scoped, tag = 'internal scratch']
  %s0 = inlined_call_operand.vmem [shape: f32[2,128,32], index: 0, kind: input, shape index: {}]
  %s1 = inlined_call_operand.vmem [shape: f32[32,96], index: 1, kind: input, shape index: {}]
  %s2 = inlined_call_operand.vmem [shape: f32[1,96], index: 2, kind: input, shape index: {}]
  %s3 = inlined_call_operand.hbm [shape: f32[2,32,128], index: 3, kind: output, shape index: {}]
  %s4 = sld [smem:[#allocation0]]
  $region45: #{tpu_custom_call.1} parent=0
    _
  %s6 = ssub.s32 1, %s4
  %s7 = scalar_select 0, %s6, %s4
  $region1: #{tpu_custom_call.1} parent=0
    #allocation2 [shape = 'u8[32768]{0}', space=vmem, size = 0x8000, scoped, tag = 'output window, operand 0']
    #allocation3 [shape = 's32[2]{0}', space=sflag, size = 0x8, scoped, tag = 'scoped memory for tpu_custom_call.1']
    %8 = vsyncpa [#allocation3], 0
    %s9 = scalar_lea.sflag [#allocation3], 1
    %10 = vsyncpa %s9, 0
    loop: start=0, step=1, limit=4
    $region2: #{tpu_custom_call.1} parent=1 // loop_pre_header
      _
    $region3: #{tpu_custom_call.1} parent=1 // loop_header
      %s12 = sphi 0, %s16
      %p13 = scmp.ge.s32.totalorder %s12, 4
      %s22 = sphi 0, %s24
      %s25 = sphi 0, %s22
      %s26 = sphi 0, %s25
      %s42 = sphi 0, %s26
      %s46 = sphi 0, %s46
      %s48 = sphi 0, %s46
      %s49 = sphi 0, %s48
      %s63 = sphi 0, %s49
      %s67 = sphi 0, %s67
      %s69 = sphi 0, %s67
      %s70 = sphi 0, %s69
      %s84 = sphi 0, %s70
      %s90 = sphi 0, %s92
      %s93 = sphi 0, %s90
      %s94 = sphi 0, %s93
      %s110 = sphi 0, %s94
    $region4: #{tpu_custom_call.1} parent=1 // loop_header_branch
      %15 = sbr.rel (%p13) target = $region8
    $region5: #{tpu_custom_call.1} parent=1 // loop_body
      %s17 = ssub.s32 %s12, 1
      %s18 = ssub.s32 %s12, 2
      %s19 = sadd.s32 %s12, 1
      %s20 = ssub.s32 %s12, %s19
      %p21 = scmp.eq.s32.totalorder %s20, 0
      %s23 = sadd.s32 %s22, 1
      %s24 = scalar_select %p21, %s22, %s23
      %p27 = pneg %p21
      %p28 = scmp.eq.s32.totalorder %s12, 1
      %p29 = por %p27, %p28
      %p30 = scmp.ne.s32.totalorder %s22, %s25
      %p31 = scmp.eq.s32.totalorder %s12, 0
      %p32 = por %p30, %p31
      %p33 = scmp.ne.s32.totalorder %s22, %s25
      %p34 = scmp.eq.s32.totalorder %s17, 1
      %p35 = por %p33, %p34
      %p36 = scmp.ne.s32.totalorder %s25, %s26
      %p37 = scmp.eq.s32.totalorder %s17, 0
      %p38 = por %p36, %p37
      %p39 = scmp.ne.s32.totalorder %s25, %s26
      %p40 = scmp.eq.s32.totalorder %s18, 1
      %p41 = por %p39, %p40
      %p43 = scmp.ne.s32.totalorder %s26, %s42
      %p44 = scmp.eq.s32.totalorder %s18, 0
      %p45 = por %p43, %p44
      %s47 = sadd.s32 %s46, 1
      %p50 = scmp.eq.s32.totalorder %s12, 1
      %p51 = scmp.ne.s32.totalorder %s46, %s48
      %p52 = scmp.eq.s32.totalorder %s12, 0
      %p53 = por %p51, %p52
      %p54 = scmp.ne.s32.totalorder %s46, %s48
      %p55 = scmp.eq.s32.totalorder %s17, 1
      %p56 = por %p54, %p55
      %p57 = scmp.ne.s32.totalorder %s48, %s49
      %p58 = scmp.eq.s32.totalorder %s17, 0
      %p59 = por %p57, %p58
      %p60 = scmp.ne.s32.totalorder %s48, %s49
      %p61 = scmp.eq.s32.totalorder %s18, 1
      %p62 = por %p60, %p61
      %p64 = scmp.ne.s32.totalorder %s49, %s63
      %p65 = scmp.eq.s32.totalorder %s18, 0
      %p66 = por %p64, %p65
      %s68 = sadd.s32 %s67, 1
      %p71 = scmp.eq.s32.totalorder %s12, 1
      %p72 = scmp.ne.s32.totalorder %s67, %s69
      %p73 = scmp.eq.s32.totalorder %s12, 0
      %p74 = por %p72, %p73
      %p75 = scmp.ne.s32.totalorder %s67, %s69
      %p76 = scmp.eq.s32.totalorder %s17, 1
      %p77 = por %p75, %p76
      %p78 = scmp.ne.s32.totalorder %s69, %s70
      %p79 = scmp.eq.s32.totalorder %s17, 0
      %p80 = por %p78, %p79
      %p81 = scmp.ne.s32.totalorder %s69, %s70
      %p82 = scmp.eq.s32.totalorder %s18, 1
      %p83 = por %p81, %p82
      %p85 = scmp.ne.s32.totalorder %s70, %s84
      %p86 = scmp.eq.s32.totalorder %s18, 0
      %p87 = por %p85, %p86
      %s88 = ssub.s32 %s12, %s19
      %p89 = scmp.eq.s32.totalorder %s88, 0
      %s91 = sadd.s32 %s90, 1
      %s92 = scalar_select %p89, %s90, %s91
      %p95 = pneg %p89
      %p96 = scmp.eq.s32.totalorder %s12, 1
      %p97 = por %p95, %p96
      %p98 = scmp.ne.s32.totalorder %s90, %s93
      %p99 = scmp.eq.s32.totalorder %s12, 0
      %p100 = por %p98, %p99
      %p101 = scmp.ne.s32.totalorder %s90, %s93
      %p102 = scmp.eq.s32.totalorder %s17, 1
      %p103 = por %p101, %p102
      %p104 = scmp.ne.s32.totalorder %s93, %s94
      %p105 = scmp.eq.s32.totalorder %s17, 0
      %p106 = por %p104, %p105
      %p107 = scmp.ne.s32.totalorder %s93, %s94
      %p108 = scmp.eq.s32.totalorder %s18, 1
      %p109 = por %p107, %p108
      %p111 = scmp.ne.s32.totalorder %s94, %s110
      %p112 = scmp.eq.s32.totalorder %s18, 0
      %p113 = por %p111, %p112
      %p114 = scmp.le.s32.totalorder 1, %s12
      %p115 = scmp.lt.s32.totalorder %s12, 3
      %p116 = pnand %p114, %p115
      %p117 = pneg %p116
      // Predicated region
      $region9: #{tpu_custom_call.1} parent=5 // pred_check
        _
      $region10: #{tpu_custom_call.1} parent=5 // pred_check_branch
        %119 = sbr.rel (%p116) target = $region12
      $region11: #{tpu_custom_call.1} parent=5 // pred_region
        %s120 = ssub.s32 %s12, 1
        // Predicated region
        $region13: #{tpu_custom_call.1} parent=11 // pred_check
          %p121 = pneg %p59
        $region14: #{tpu_custom_call.1} parent=11 // pred_check_branch
          %123 = sbr.rel (%p121) target = $region16
        $region15: #{tpu_custom_call.1} parent=11 // pred_region
          _
        $region16: #{tpu_custom_call.1} parent=11 // pred_fallthru
          _
        // Predicated region
        $region17: #{tpu_custom_call.1} parent=11 // pred_check
          %p124 = pneg %p80
        $region18: #{tpu_custom_call.1} parent=11 // pred_check_branch
          %126 = sbr.rel (%p124) target = $region20
        $region19: #{tpu_custom_call.1} parent=11 // pred_region
          _
        $region20: #{tpu_custom_call.1} parent=11 // pred_fallthru
          _
      $region12: #{tpu_custom_call.1} parent=5 // pred_fallthru
        _
      %p127 = scmp.lt.s32.totalorder %s12, 2
      // Predicated region
      $region21: #{tpu_custom_call.1} parent=5 // pred_check
        %p128 = pneg %p127
      $region22: #{tpu_custom_call.1} parent=5 // pred_check_branch
        %130 = sbr.rel (%p128) target = $region24
      $region23: #{tpu_custom_call.1} parent=5 // pred_region
        // Predicated region
        $region25: #{tpu_custom_call.1} parent=23 // pred_check
          %p131 = pneg %p32
        $region26: #{tpu_custom_call.1} parent=23 // pred_check_branch
          %133 = sbr.rel (%p131) target = $region28
        $region27: #{tpu_custom_call.1} parent=23 // pred_region
          %p134 = scmp.lt.s32.totalorder %s12, 1
          %s135 = scalar_select %p134, %s12, 1
          %s136 = smul.addr %s135, 16
          %s137 = smul.addr %s136, 8
          %s138 = scalar_lea.vmem %s0, %s137
        $region28: #{tpu_custom_call.1} parent=23 // pred_fallthru
          _
      $region24: #{tpu_custom_call.1} parent=5 // pred_fallthru
        _
      %p139 = scmp.le.s32.totalorder 1, %s12
      %p140 = scmp.lt.s32.totalorder %s12, 3
      %p141 = pnand %p139, %p140
      %p142 = pneg %p141
      // Predicated region
      $region29: #{tpu_custom_call.1} parent=5 // pred_check
        _
      $region30: #{tpu_custom_call.1} parent=5 // pred_check_branch
        %144 = sbr.rel (%p141) target = $region32
      $region31: #{tpu_custom_call.1} parent=5 // pred_region
        %s145 = ssub.s32 %s12, 1
        %p146 = scmp.lt.s32.totalorder %s17, 1
        %s147 = scalar_select %p146, %s17, 1
        %s148 = smul.addr %s147, 16
        %s149 = smul.addr %s148, 8
        %s150 = scalar_lea.vmem %s0, %s149
        %p151 = pneg %p38
        %p152 = pneg %p35
        %p153 = pneg %p59
        %p154 = pneg %p56
        %p155 = pneg %p80
        %p156 = pneg %p77
        %p157 = pneg %p106
        %p158 = pneg %p103
        %s159 = sand.u32 %s93, 1
        %s160 = scalar_lea.sflag [#allocation3], %s159
        %s161 = sand.u32 %s93, 1
        %s162 = smul.addr %s161, 32
        %s163 = scalar_lea.vmem [#allocation2], %s162
        %p164 = scmp.lt.s32.totalorder %s17, 1
        %s165 = scalar_select %p164, %s17, 1
        %s166 = smul.addr %s165, 16
        %s167 = smul.addr %s166, 8
        %s168 = scalar_lea.vmem %s0, %s167
        %v169 = vld [vmem:[%s168] sm:$0xff]
        %v170 = vld [vmem:[%s168 + $0x8] sm:$0xff]
        %v171 = vld [vmem:[%s168 + $0x10] sm:$0xff]
        %v172 = vld [vmem:[%s168 + $0x18] sm:$0xff]
        %v173 = vld [vmem:[%s168 + $0x20] sm:$0xff]
        %v174 = vld [vmem:[%s168 + $0x28] sm:$0xff]
        %v175 = vld [vmem:[%s168 + $0x30] sm:$0xff]
        %v176 = vld [vmem:[%s168 + $0x38] sm:$0xff]
        %v177 = vld [vmem:[%s168 + $0x40] sm:$0xff]
        %v178 = vld [vmem:[%s168 + $0x48] sm:$0xff]
        %v179 = vld [vmem:[%s168 + $0x50] sm:$0xff]
        %v180 = vld [vmem:[%s168 + $0x58] sm:$0xff]
        %v181 = vld [vmem:[%s168 + $0x60] sm:$0xff]
        %v182 = vld [vmem:[%s168 + $0x68] sm:$0xff]
        %v183 = vld [vmem:[%s168 + $0x70] sm:$0xff]
        %v184 = vld [vmem:[%s168 + $0x78] sm:$0xff]
        %v185 = vld [vmem:[%s1] sm:$0xff]
        %v186 = vld [vmem:[%s1 + $0x8] sm:$0xff]
        %v187 = vld [vmem:[%s1 + $0x10] sm:$0xff]
        %v188 = vld [vmem:[%s1 + $0x18] sm:$0xff]
        %v189 = vld [vmem:[%s2] sm:$0x1]
        %v191 = vlaneseq
        %v192 = vshrl.u32 %v191, 7
        %v193 = vsub.s32 0, %v192
        %v194 = vrot.slane %v189, %v193
        %vm196 = vcmask 261120
        %v198 = vsel %vm196, %v169, 0
        %v201 = vsel %vm196, %v170, 0
        %v204 = vsel %vm196, %v171, 0
        %v207 = vsel %vm196, %v172, 0
        %v210 = vsel %vm196, %v173, 0
        %v213 = vsel %vm196, %v174, 0
        %v216 = vsel %vm196, %v175, 0
        %v219 = vsel %vm196, %v176, 0
        %v222 = vsel %vm196, %v177, 0
        %v225 = vsel %vm196, %v178, 0
        %v228 = vsel %vm196, %v179, 0
        %v231 = vsel %vm196, %v180, 0
        %v234 = vsel %vm196, %v181, 0
        %v237 = vsel %vm196, %v182, 0
        %v240 = vsel %vm196, %v183, 0
        %v243 = vsel %vm196, %v184, 0
        %245 = vmatprep.subr.mxu0 0.0
        %246 = vmatpush1.msra.mxu0 0.0
        %247 = vmatprep.subr.mxu0 0.0
        %248 = vmatpush1.msra.mxu0 0.0
        %249 = vmatprep.subr.mxu0 0.0
        %250 = vmatpush1.msra.mxu0 0.0
        %251 = vmatprep.subr.mxu0 0.0
        %252 = vmatpush1.msra.mxu0 0.0
        %253 = vmatprep.subr.mxu0 0.0
        %254 = vmatpush1.msra.mxu0 0.0
        %255 = vmatprep.subr.mxu0 0.0
        %256 = vmatpush1.msra.mxu0 0.0
        %257 = vmatprep.subr.mxu0 0.0
        %258 = vmatpush1.msra.mxu0 0.0
        %259 = vmatprep.subr.mxu0 0.0
        %260 = vmatpush1.msra.mxu0 0.0
        %261 = vmatprep.subr.mxu0 0.0
        %262 = vmatpush1.msra.mxu0 0.0
        %263 = vmatprep.subr.mxu0 0.0
        %264 = vmatpush1.msra.mxu0 0.0
        %265 = vmatprep.subr.mxu0 0.0
        %266 = vmatpush1.msra.mxu0 0.0
        %267 = vmatprep.subr.mxu0 0.0
        %268 = vmatpush1.msra.mxu0 0.0
        %269 = vmatprep.subr.mxu0 0.0
        %270 = vmatpush1.msra.mxu0 %v188
        %271 = vmatprep.subr.mxu0 0.0
        %272 = vmatpush1.msra.mxu0 %v187
        %273 = vmatprep.subr.mxu0 0.0
        %274 = vmatpush1.msra.mxu0 %v186
        %275 = vmatprep.subr.mxu0 0.0
        %276 = vmatpush1.msra.mxu0 %v185
        %277 = vmatprep.subr.mxu0 0.0
        %278 = vmatpush2.msra.mxu0 0.0
        %279 = vmatprep.subr.mxu0 0.0
        %280 = vmatpush2.msra.mxu0 0.0
        %281 = vmatprep.subr.mxu0 0.0
        %282 = vmatpush2.msra.mxu0 0.0
        %283 = vmatprep.subr.mxu0 0.0
        %284 = vmatpush2.msra.mxu0 0.0
        %285 = vmatprep.subr.mxu0 0.0
        %286 = vmatpush2.msra.mxu0 0.0
        %287 = vmatprep.subr.mxu0 0.0
        %288 = vmatpush2.msra.mxu0 0.0
        %289 = vmatprep.subr.mxu0 0.0
        %290 = vmatpush2.msra.mxu0 0.0
        %291 = vmatprep.subr.mxu0 0.0
        %292 = vmatpush2.msra.mxu0 0.0
        %293 = vmatprep.subr.mxu0 0.0
        %294 = vmatpush2.msra.mxu0 0.0
        %295 = vmatprep.subr.mxu0 0.0
        %296 = vmatpush2.msra.mxu0 0.0
        %297 = vmatprep.subr.mxu0 0.0
        %298 = vmatpush2.msra.mxu0 0.0
        %299 = vmatprep.subr.mxu0 0.0
        %300 = vmatpush2.msra.mxu0 0.0
        %301 = vmatprep.subr.mxu0 0.0
        %302 = vmatpush2.msra.mxu0 0.0
        %303 = vmatprep.subr.mxu0 0.0
        %304 = vmatpush2.msra.mxu0 0.0
        %305 = vmatprep.subr.mxu0 0.0
        %306 = vmatpush2.msra.mxu0 0.0
        %307 = vmatprep.subr.mxu0 0.0
        %308 = vmatpush2.msra.mxu0 0.0
        %309 = vmatprep.mubr.f32.mxu0 0.0
        %310 = vmatmul.mubr.f32.gmra.mxu0 %v198
        %v311 = vpop.f32.mrf.mxu0
        %v312 = vadd.f32 %v194, %v311
        %v313 = vpop.f32.mrf.mxu0
        %314 = vmatprep.mubr.f32.mxu0 0.0
        %315 = vmatmul.mubr.f32.gmra.mxu0 %v201
        %v316 = vpop.f32.mrf.mxu0
        %v317 = vadd.f32 %v194, %v316
        %v318 = vpop.f32.mrf.mxu0
        %319 = vmatprep.mubr.f32.mxu0 0.0
        %320 = vmatmul.mubr.f32.gmra.mxu0 %v204
        %v321 = vpop.f32.mrf.mxu0
        %v322 = vadd.f32 %v194, %v321
        %v323 = vpop.f32.mrf.mxu0
        %324 = vmatprep.mubr.f32.mxu0 0.0
        %325 = vmatmul.mubr.f32.gmra.mxu0 %v207
        %v326 = vpop.f32.mrf.mxu0
        %v327 = vadd.f32 %v194, %v326
        %v328 = vpop.f32.mrf.mxu0
        %329 = vmatprep.mubr.f32.mxu0 0.0
        %330 = vmatmul.mubr.f32.gmra.mxu0 %v210
        %v331 = vpop.f32.mrf.mxu0
        %v332 = vadd.f32 %v194, %v331
        %v333 = vpop.f32.mrf.mxu0
        %334 = vmatprep.mubr.f32.mxu0 0.0
        %335 = vmatmul.mubr.f32.gmra.mxu0 %v213
        %v336 = vpop.f32.mrf.mxu0
        %v337 = vadd.f32 %v194, %v336
        %v338 = vpop.f32.mrf.mxu0
        %339 = vmatprep.mubr.f32.mxu0 0.0
        %340 = vmatmul.mubr.f32.gmra.mxu0 %v216
        %v341 = vpop.f32.mrf.mxu0
        %v342 = vadd.f32 %v194, %v341
        %v343 = vpop.f32.mrf.mxu0
        %344 = vmatprep.mubr.f32.mxu0 0.0
        %345 = vmatmul.mubr.f32.gmra.mxu0 %v219
        %v346 = vpop.f32.mrf.mxu0
        %v347 = vadd.f32 %v194, %v346
        %v348 = vpop.f32.mrf.mxu0
        %349 = vmatprep.mubr.f32.mxu0 0.0
        %350 = vmatmul.mubr.f32.gmra.mxu0 %v222
        %v351 = vpop.f32.mrf.mxu0
        %v352 = vadd.f32 %v194, %v351
        %v353 = vpop.f32.mrf.mxu0
        %354 = vmatprep.mubr.f32.mxu0 0.0
        %355 = vmatmul.mubr.f32.gmra.mxu0 %v225
        %v356 = vpop.f32.mrf.mxu0
        %v357 = vadd.f32 %v194, %v356
        %v358 = vpop.f32.mrf.mxu0
        %359 = vmatprep.mubr.f32.mxu0 0.0
        %360 = vmatmul.mubr.f32.gmra.mxu0 %v228
        %v361 = vpop.f32.mrf.mxu0
        %v362 = vadd.f32 %v194, %v361
        %v363 = vpop.f32.mrf.mxu0
        %364 = vmatprep.mubr.f32.mxu0 0.0
        %365 = vmatmul.mubr.f32.gmra.mxu0 %v231
        %v366 = vpop.f32.mrf.mxu0
        %v367 = vadd.f32 %v194, %v366
        %v368 = vpop.f32.mrf.mxu0
        %369 = vmatprep.mubr.f32.mxu0 0.0
        %370 = vmatmul.mubr.f32.gmra.mxu0 %v234
        %v371 = vpop.f32.mrf.mxu0
        %v372 = vadd.f32 %v194, %v371
        %v373 = vpop.f32.mrf.mxu0
        %374 = vmatprep.mubr.f32.mxu0 0.0
        %375 = vmatmul.mubr.f32.gmra.mxu0 %v237
        %v376 = vpop.f32.mrf.mxu0
        %v377 = vadd.f32 %v194, %v376
        %v378 = vpop.f32.mrf.mxu0
        %379 = vmatprep.mubr.f32.mxu0 0.0
        %380 = vmatmul.mubr.f32.gmra.mxu0 %v240
        %v381 = vpop.f32.mrf.mxu0
        %v382 = vadd.f32 %v194, %v381
        %v383 = vpop.f32.mrf.mxu0
        %384 = vmatprep.mubr.f32.mxu0 0.0
        %385 = vmatmul.mubr.f32.gmra.mxu0 %v243
        %v386 = vpop.f32.mrf.mxu0
        %v387 = vadd.f32 %v194, %v386
        %v388 = vpop.f32.mrf.mxu0
        %389 = vdwg.mxu0
        %406 = vrot.lane.b32.xlu0 %v312, 96
        %v407 = vpop.permute.xlu0 %406
        %408 = vrot.lane.b32.xlu0 %v317, 96
        %v409 = vpop.permute.xlu0 %408
        %410 = vrot.lane.b32.xlu0 %v322, 96
        %v411 = vpop.permute.xlu0 %410
        %412 = vrot.lane.b32.xlu0 %v327, 96
        %v413 = vpop.permute.xlu0 %412
        %414 = vrot.lane.b32.xlu0 %v332, 96
        %v415 = vpop.permute.xlu0 %414
        %416 = vrot.lane.b32.xlu0 %v337, 96
        %v417 = vpop.permute.xlu0 %416
        %418 = vrot.lane.b32.xlu0 %v342, 96
        %v419 = vpop.permute.xlu0 %418
        %420 = vrot.lane.b32.xlu0 %v347, 96
        %v421 = vpop.permute.xlu0 %420
        %422 = vrot.lane.b32.xlu0 %v352, 96
        %v423 = vpop.permute.xlu0 %422
        %424 = vrot.lane.b32.xlu0 %v357, 96
        %v425 = vpop.permute.xlu0 %424
        %426 = vrot.lane.b32.xlu0 %v362, 96
        %v427 = vpop.permute.xlu0 %426
        %428 = vrot.lane.b32.xlu0 %v367, 96
        %v429 = vpop.permute.xlu0 %428
        %430 = vrot.lane.b32.xlu0 %v372, 96
        %v431 = vpop.permute.xlu0 %430
        %432 = vrot.lane.b32.xlu0 %v377, 96
        %v433 = vpop.permute.xlu0 %432
        %434 = vrot.lane.b32.xlu0 %v382, 96
        %v435 = vpop.permute.xlu0 %434
        %436 = vrot.lane.b32.xlu0 %v387, 96
        %v437 = vpop.permute.xlu0 %436
        %v454 = vmul.f32 %v312, %v407
        %v455 = vmul.f32 %v317, %v409
        %v456 = vmul.f32 %v312, %v411
        %v457 = vmul.f32 %v317, %v413
        %v458 = vmul.f32 %v312, %v415
        %v459 = vmul.f32 %v317, %v417
        %v460 = vmul.f32 %v312, %v419
        %v461 = vmul.f32 %v317, %v421
        %v462 = vmul.f32 %v312, %v423
        %v463 = vmul.f32 %v317, %v425
        %v464 = vmul.f32 %v312, %v427
        %v465 = vmul.f32 %v317, %v429
        %v466 = vmul.f32 %v312, %v431
        %v467 = vmul.f32 %v317, %v433
        %v468 = vmul.f32 %v312, %v435
        %v469 = vmul.f32 %v317, %v437
        %v470 = vmul.f32 %v322, %v407
        %v471 = vmul.f32 %v327, %v409
        %v472 = vmul.f32 %v322, %v411
        %v473 = vmul.f32 %v327, %v413
        %v474 = vmul.f32 %v322, %v415
        %v475 = vmul.f32 %v327, %v417
        %v476 = vmul.f32 %v322, %v419
        %v477 = vmul.f32 %v327, %v421
        %v478 = vmul.f32 %v322, %v423
        %v479 = vmul.f32 %v327, %v425
        %v480 = vmul.f32 %v322, %v427
        %v481 = vmul.f32 %v327, %v429
        %v482 = vmul.f32 %v322, %v431
        %v483 = vmul.f32 %v327, %v433
        %v484 = vmul.f32 %v322, %v435
        %v485 = vmul.f32 %v327, %v437
        %v486 = vmul.f32 %v332, %v407
        %v487 = vmul.f32 %v337, %v409
        %v488 = vmul.f32 %v332, %v411
        %v489 = vmul.f32 %v337, %v413
        %v490 = vmul.f32 %v332, %v415
        %v491 = vmul.f32 %v337, %v417
        %v492 = vmul.f32 %v332, %v419
        %v493 = vmul.f32 %v337, %v421
        %v494 = vmul.f32 %v332, %v423
        %v495 = vmul.f32 %v337, %v425
        %v496 = vmul.f32 %v332, %v427
        %v497 = vmul.f32 %v337, %v429
        %v498 = vmul.f32 %v332, %v431
        %v499 = vmul.f32 %v337, %v433
        %v500 = vmul.f32 %v332, %v435
        %v501 = vmul.f32 %v337, %v437
        %v502 = vmul.f32 %v342, %v407
        %v503 = vmul.f32 %v347, %v409
        %v504 = vmul.f32 %v342, %v411
        %v505 = vmul.f32 %v347, %v413
        %v506 = vmul.f32 %v342, %v415
        %v507 = vmul.f32 %v347, %v417
        %v508 = vmul.f32 %v342, %v419
        %v509 = vmul.f32 %v347, %v421
        %v510 = vmul.f32 %v342, %v423
        %v511 = vmul.f32 %v347, %v425
        %v512 = vmul.f32 %v342, %v427
        %v513 = vmul.f32 %v347, %v429
        %v514 = vmul.f32 %v342, %v431
        %v515 = vmul.f32 %v347, %v433
        %v516 = vmul.f32 %v342, %v435
        %v517 = vmul.f32 %v347, %v437
        %v518 = vmul.f32 %v352, %v407
        %v519 = vmul.f32 %v357, %v409
        %v520 = vmul.f32 %v352, %v411
        %v521 = vmul.f32 %v357, %v413
        %v522 = vmul.f32 %v352, %v415
        %v523 = vmul.f32 %v357, %v417
        %v524 = vmul.f32 %v352, %v419
        %v525 = vmul.f32 %v357, %v421
        %v526 = vmul.f32 %v352, %v423
        %v527 = vmul.f32 %v357, %v425
        %v528 = vmul.f32 %v352, %v427
        %v529 = vmul.f32 %v357, %v429
        %v530 = vmul.f32 %v352, %v431
        %v531 = vmul.f32 %v357, %v433
        %v532 = vmul.f32 %v352, %v435
        %v533 = vmul.f32 %v357, %v437
        %v534 = vmul.f32 %v362, %v407
        %v535 = vmul.f32 %v367, %v409
        %v536 = vmul.f32 %v362, %v411
        %v537 = vmul.f32 %v367, %v413
        %v538 = vmul.f32 %v362, %v415
        %v539 = vmul.f32 %v367, %v417
        %v540 = vmul.f32 %v362, %v419
        %v541 = vmul.f32 %v367, %v421
        %v542 = vmul.f32 %v362, %v423
        %v543 = vmul.f32 %v367, %v425
        %v544 = vmul.f32 %v362, %v427
        %v545 = vmul.f32 %v367, %v429
        %v546 = vmul.f32 %v362, %v431
        %v547 = vmul.f32 %v367, %v433
        %v548 = vmul.f32 %v362, %v435
        %v549 = vmul.f32 %v367, %v437
        %v550 = vmul.f32 %v372, %v407
        %v551 = vmul.f32 %v377, %v409
        %v552 = vmul.f32 %v372, %v411
        %v553 = vmul.f32 %v377, %v413
        %v554 = vmul.f32 %v372, %v415
        %v555 = vmul.f32 %v377, %v417
        %v556 = vmul.f32 %v372, %v419
        %v557 = vmul.f32 %v377, %v421
        %v558 = vmul.f32 %v372, %v423
        %v559 = vmul.f32 %v377, %v425
        %v560 = vmul.f32 %v372, %v427
        %v561 = vmul.f32 %v377, %v429
        %v562 = vmul.f32 %v372, %v431
        %v563 = vmul.f32 %v377, %v433
        %v564 = vmul.f32 %v372, %v435
        %v565 = vmul.f32 %v377, %v437
        %v566 = vmul.f32 %v382, %v407
        %v567 = vmul.f32 %v387, %v409
        %v568 = vmul.f32 %v382, %v411
        %v569 = vmul.f32 %v387, %v413
        %v570 = vmul.f32 %v382, %v415
        %v571 = vmul.f32 %v387, %v417
        %v572 = vmul.f32 %v382, %v419
        %v573 = vmul.f32 %v387, %v421
        %v574 = vmul.f32 %v382, %v423
        %v575 = vmul.f32 %v387, %v425
        %v576 = vmul.f32 %v382, %v427
        %v577 = vmul.f32 %v387, %v429
        %v578 = vmul.f32 %v382, %v431
        %v579 = vmul.f32 %v387, %v433
        %v580 = vmul.f32 %v382, %v435
        %v581 = vmul.f32 %v387, %v437
        %v582 = vsel %vm196, %v454, 0.0
        %v583 = vsel %vm196, %v455, 0.0
        %v584 = vadd.f32 %v582, %v583
        %v585 = vrot.slane %v584, 4
        %v586 = vadd.f32 %v584, %v585
        %v587 = vrot.slane %v586, 2
        %v588 = vadd.f32 %v586, %v587
        %v589 = vrot.slane %v588, 1
        %v590 = vadd.f32 %v588, %v589
        %v591 = vsel %vm196, %v456, 0.0
        %v592 = vsel %vm196, %v457, 0.0
        %v593 = vadd.f32 %v591, %v592
        %v594 = vrot.slane %v593, 4
        %v595 = vadd.f32 %v593, %v594
        %v596 = vrot.slane %v595, 2
        %v597 = vadd.f32 %v595, %v596
        %v598 = vrot.slane %v597, 1
        %v599 = vadd.f32 %v597, %v598
        %v600 = vsel %vm196, %v458, 0.0
        %v601 = vsel %vm196, %v459, 0.0
        %v602 = vadd.f32 %v600, %v601
        %v603 = vrot.slane %v602, 4
        %v604 = vadd.f32 %v602, %v603
        %v605 = vrot.slane %v604, 2
        %v606 = vadd.f32 %v604, %v605
        %v607 = vrot.slane %v606, 1
        %v608 = vadd.f32 %v606, %v607
        %v609 = vsel %vm196, %v460, 0.0
        %v610 = vsel %vm196, %v461, 0.0
        %v611 = vadd.f32 %v609, %v610
        %v612 = vrot.slane %v611, 4
        %v613 = vadd.f32 %v611, %v612
        %v614 = vrot.slane %v613, 2
        %v615 = vadd.f32 %v613, %v614
        %v616 = vrot.slane %v615, 1
        %v617 = vadd.f32 %v615, %v616
        %v618 = vsel %vm196, %v462, 0.0
        %v619 = vsel %vm196, %v463, 0.0
        %v620 = vadd.f32 %v618, %v619
        %v621 = vrot.slane %v620, 4
        %v622 = vadd.f32 %v620, %v621
        %v623 = vrot.slane %v622, 2
        %v624 = vadd.f32 %v622, %v623
        %v625 = vrot.slane %v624, 1
        %v626 = vadd.f32 %v624, %v625
        %v627 = vsel %vm196, %v464, 0.0
        %v628 = vsel %vm196, %v465, 0.0
        %v629 = vadd.f32 %v627, %v628
        %v630 = vrot.slane %v629, 4
        %v631 = vadd.f32 %v629, %v630
        %v632 = vrot.slane %v631, 2
        %v633 = vadd.f32 %v631, %v632
        %v634 = vrot.slane %v633, 1
        %v635 = vadd.f32 %v633, %v634
        %v636 = vsel %vm196, %v466, 0.0
        %v637 = vsel %vm196, %v467, 0.0
        %v638 = vadd.f32 %v636, %v637
        %v639 = vrot.slane %v638, 4
        %v640 = vadd.f32 %v638, %v639
        %v641 = vrot.slane %v640, 2
        %v642 = vadd.f32 %v640, %v641
        %v643 = vrot.slane %v642, 1
        %v644 = vadd.f32 %v642, %v643
        %v645 = vsel %vm196, %v468, 0.0
        %v646 = vsel %vm196, %v469, 0.0
        %v647 = vadd.f32 %v645, %v646
        %v648 = vrot.slane %v647, 4
        %v649 = vadd.f32 %v647, %v648
        %v650 = vrot.slane %v649, 2
        %v651 = vadd.f32 %v649, %v650
        %v652 = vrot.slane %v651, 1
        %v653 = vadd.f32 %v651, %v652
        %v654 = vsel %vm196, %v470, 0.0
        %v655 = vsel %vm196, %v471, 0.0
        %v656 = vadd.f32 %v654, %v655
        %v657 = vrot.slane %v656, 4
        %v658 = vadd.f32 %v656, %v657
        %v659 = vrot.slane %v658, 2
        %v660 = vadd.f32 %v658, %v659
        %v661 = vrot.slane %v660, 1
        %v662 = vadd.f32 %v660, %v661
        %v663 = vsel %vm196, %v472, 0.0
        %v664 = vsel %vm196, %v473, 0.0
        %v665 = vadd.f32 %v663, %v664
        %v666 = vrot.slane %v665, 4
        %v667 = vadd.f32 %v665, %v666
        %v668 = vrot.slane %v667, 2
        %v669 = vadd.f32 %v667, %v668
        %v670 = vrot.slane %v669, 1
        %v671 = vadd.f32 %v669, %v670
        %v672 = vsel %vm196, %v474, 0.0
        %v673 = vsel %vm196, %v475, 0.0
        %v674 = vadd.f32 %v672, %v673
        %v675 = vrot.slane %v674, 4
        %v676 = vadd.f32 %v674, %v675
        %v677 = vrot.slane %v676, 2
        %v678 = vadd.f32 %v676, %v677
        %v679 = vrot.slane %v678, 1
        %v680 = vadd.f32 %v678, %v679
        %v681 = vsel %vm196, %v476, 0.0
        %v682 = vsel %vm196, %v477, 0.0
        %v683 = vadd.f32 %v681, %v682
        %v684 = vrot.slane %v683, 4
        %v685 = vadd.f32 %v683, %v684
        %v686 = vrot.slane %v685, 2
        %v687 = vadd.f32 %v685, %v686
        %v688 = vrot.slane %v687, 1
        %v689 = vadd.f32 %v687, %v688
        %v690 = vsel %vm196, %v478, 0.0
        %v691 = vsel %vm196, %v479, 0.0
        %v692 = vadd.f32 %v690, %v691
        %v693 = vrot.slane %v692, 4
        %v694 = vadd.f32 %v692, %v693
        %v695 = vrot.slane %v694, 2
        %v696 = vadd.f32 %v694, %v695
        %v697 = vrot.slane %v696, 1
        %v698 = vadd.f32 %v696, %v697
        %v699 = vsel %vm196, %v480, 0.0
        %v700 = vsel %vm196, %v481, 0.0
        %v701 = vadd.f32 %v699, %v700
        %v702 = vrot.slane %v701, 4
        %v703 = vadd.f32 %v701, %v702
        %v704 = vrot.slane %v703, 2
        %v705 = vadd.f32 %v703, %v704
        %v706 = vrot.slane %v705, 1
        %v707 = vadd.f32 %v705, %v706
        %v708 = vsel %vm196, %v482, 0.0
        %v709 = vsel %vm196, %v483, 0.0
        %v710 = vadd.f32 %v708, %v709
        %v711 = vrot.slane %v710, 4
        %v712 = vadd.f32 %v710, %v711
        %v713 = vrot.slane %v712, 2
        %v714 = vadd.f32 %v712, %v713
        %v715 = vrot.slane %v714, 1
        %v716 = vadd.f32 %v714, %v715
        %v717 = vsel %vm196, %v484, 0.0
        %v718 = vsel %vm196, %v485, 0.0
        %v719 = vadd.f32 %v717, %v718
        %v720 = vrot.slane %v719, 4
        %v721 = vadd.f32 %v719, %v720
        %v722 = vrot.slane %v721, 2
        %v723 = vadd.f32 %v721, %v722
        %v724 = vrot.slane %v723, 1
        %v725 = vadd.f32 %v723, %v724
        %v726 = vsel %vm196, %v486, 0.0
        %v727 = vsel %vm196, %v487, 0.0
        %v728 = vadd.f32 %v726, %v727
        %v729 = vrot.slane %v728, 4
        %v730 = vadd.f32 %v728, %v729
        %v731 = vrot.slane %v730, 2
        %v732 = vadd.f32 %v730, %v731
        %v733 = vrot.slane %v732, 1
        %v734 = vadd.f32 %v732, %v733
        %v735 = vsel %vm196, %v488, 0.0
        %v736 = vsel %vm196, %v489, 0.0
        %v737 = vadd.f32 %v735, %v736
        %v738 = vrot.slane %v737, 4
        %v739 = vadd.f32 %v737, %v738
        %v740 = vrot.slane %v739, 2
        %v741 = vadd.f32 %v739, %v740
        %v742 = vrot.slane %v741, 1
        %v743 = vadd.f32 %v741, %v742
        %v744 = vsel %vm196, %v490, 0.0
        %v745 = vsel %vm196, %v491, 0.0
        %v746 = vadd.f32 %v744, %v745
        %v747 = vrot.slane %v746, 4
        %v748 = vadd.f32 %v746, %v747
        %v749 = vrot.slane %v748, 2
        %v750 = vadd.f32 %v748, %v749
        %v751 = vrot.slane %v750, 1
        %v752 = vadd.f32 %v750, %v751
        %v753 = vsel %vm196, %v492, 0.0
        %v754 = vsel %vm196, %v493, 0.0
        %v755 = vadd.f32 %v753, %v754
        %v756 = vrot.slane %v755, 4
        %v757 = vadd.f32 %v755, %v756
        %v758 = vrot.slane %v757, 2
        %v759 = vadd.f32 %v757, %v758
        %v760 = vrot.slane %v759, 1
        %v761 = vadd.f32 %v759, %v760
        %v762 = vsel %vm196, %v494, 0.0
        %v763 = vsel %vm196, %v495, 0.0
        %v764 = vadd.f32 %v762, %v763
        %v765 = vrot.slane %v764, 4
        %v766 = vadd.f32 %v764, %v765
        %v767 = vrot.slane %v766, 2
        %v768 = vadd.f32 %v766, %v767
        %v769 = vrot.slane %v768, 1
        %v770 = vadd.f32 %v768, %v769
        %v771 = vsel %vm196, %v496, 0.0
        %v772 = vsel %vm196, %v497, 0.0
        %v773 = vadd.f32 %v771, %v772
        %v774 = vrot.slane %v773, 4
        %v775 = vadd.f32 %v773, %v774
        %v776 = vrot.slane %v775, 2
        %v777 = vadd.f32 %v775, %v776
        %v778 = vrot.slane %v777, 1
        %v779 = vadd.f32 %v777, %v778
        %v780 = vsel %vm196, %v498, 0.0
        %v781 = vsel %vm196, %v499, 0.0
        %v782 = vadd.f32 %v780, %v781
        %v783 = vrot.slane %v782, 4
        %v784 = vadd.f32 %v782, %v783
        %v785 = vrot.slane %v784, 2
        %v786 = vadd.f32 %v784, %v785
        %v787 = vrot.slane %v786, 1
        %v788 = vadd.f32 %v786, %v787
        %v789 = vsel %vm196, %v500, 0.0
        %v790 = vsel %vm196, %v501, 0.0
        %v791 = vadd.f32 %v789, %v790
        %v792 = vrot.slane %v791, 4
        %v793 = vadd.f32 %v791, %v792
        %v794 = vrot.slane %v793, 2
        %v795 = vadd.f32 %v793, %v794
        %v796 = vrot.slane %v795, 1
        %v797 = vadd.f32 %v795, %v796
        %v798 = vsel %vm196, %v502, 0.0
        %v799 = vsel %vm196, %v503, 0.0
        %v800 = vadd.f32 %v798, %v799
        %v801 = vrot.slane %v800, 4
        %v802 = vadd.f32 %v800, %v801
        %v803 = vrot.slane %v802, 2
        %v804 = vadd.f32 %v802, %v803
        %v805 = vrot.slane %v804, 1
        %v806 = vadd.f32 %v804, %v805
        %v807 = vsel %vm196, %v504, 0.0
        %v808 = vsel %vm196, %v505, 0.0
        %v809 = vadd.f32 %v807, %v808
        %v810 = vrot.slane %v809, 4
        %v811 = vadd.f32 %v809, %v810
        %v812 = vrot.slane %v811, 2
        %v813 = vadd.f32 %v811, %v812
        %v814 = vrot.slane %v813, 1
        %v815 = vadd.f32 %v813, %v814
        %v816 = vsel %vm196, %v506, 0.0
        %v817 = vsel %vm196, %v507, 0.0
        %v818 = vadd.f32 %v816, %v817
        %v819 = vrot.slane %v818, 4
        %v820 = vadd.f32 %v818, %v819
        %v821 = vrot.slane %v820, 2
        %v822 = vadd.f32 %v820, %v821
        %v823 = vrot.slane %v822, 1
        %v824 = vadd.f32 %v822, %v823
        %v825 = vsel %vm196, %v508, 0.0
        %v826 = vsel %vm196, %v509, 0.0
        %v827 = vadd.f32 %v825, %v826
        %v828 = vrot.slane %v827, 4
        %v829 = vadd.f32 %v827, %v828
        %v830 = vrot.slane %v829, 2
        %v831 = vadd.f32 %v829, %v830
        %v832 = vrot.slane %v831, 1
        %v833 = vadd.f32 %v831, %v832
        %v834 = vsel %vm196, %v510, 0.0
        %v835 = vsel %vm196, %v511, 0.0
        %v836 = vadd.f32 %v834, %v835
        %v837 = vrot.slane %v836, 4
        %v838 = vadd.f32 %v836, %v837
        %v839 = vrot.slane %v838, 2
        %v840 = vadd.f32 %v838, %v839
        %v841 = vrot.slane %v840, 1
        %v842 = vadd.f32 %v840, %v841
        %v843 = vsel %vm196, %v512, 0.0
        %v844 = vsel %vm196, %v513, 0.0
        %v845 = vadd.f32 %v843, %v844
        %v846 = vrot.slane %v845, 4
        %v847 = vadd.f32 %v845, %v846
        %v848 = vrot.slane %v847, 2
        %v849 = vadd.f32 %v847, %v848
        %v850 = vrot.slane %v849, 1
        %v851 = vadd.f32 %v849, %v850
        %v852 = vsel %vm196, %v514, 0.0
        %v853 = vsel %vm196, %v515, 0.0
        %v854 = vadd.f32 %v852, %v853
        %v855 = vrot.slane %v854, 4
        %v856 = vadd.f32 %v854, %v855
        %v857 = vrot.slane %v856, 2
        %v858 = vadd.f32 %v856, %v857
        %v859 = vrot.slane %v858, 1
        %v860 = vadd.f32 %v858, %v859
        %v861 = vsel %vm196, %v516, 0.0
        %v862 = vsel %vm196, %v517, 0.0
        %v863 = vadd.f32 %v861, %v862
        %v864 = vrot.slane %v863, 4
        %v865 = vadd.f32 %v863, %v864
        %v866 = vrot.slane %v865, 2
        %v867 = vadd.f32 %v865, %v866
        %v868 = vrot.slane %v867, 1
        %v869 = vadd.f32 %v867, %v868
        %v870 = vsel %vm196, %v518, 0.0
        %v871 = vsel %vm196, %v519, 0.0
        %v872 = vadd.f32 %v870, %v871
        %v873 = vrot.slane %v872, 4
        %v874 = vadd.f32 %v872, %v873
        %v875 = vrot.slane %v874, 2
        %v876 = vadd.f32 %v874, %v875
        %v877 = vrot.slane %v876, 1
        %v878 = vadd.f32 %v876, %v877
        %v879 = vsel %vm196, %v520, 0.0
        %v880 = vsel %vm196, %v521, 0.0
        %v881 = vadd.f32 %v879, %v880
        %v882 = vrot.slane %v881, 4
        %v883 = vadd.f32 %v881, %v882
        %v884 = vrot.slane %v883, 2
        %v885 = vadd.f32 %v883, %v884
        %v886 = vrot.slane %v885, 1
        %v887 = vadd.f32 %v885, %v886
        %v888 = vsel %vm196, %v522, 0.0
        %v889 = vsel %vm196, %v523, 0.0
        %v890 = vadd.f32 %v888, %v889
        %v891 = vrot.slane %v890, 4
        %v892 = vadd.f32 %v890, %v891
        %v893 = vrot.slane %v892, 2
        %v894 = vadd.f32 %v892, %v893
        %v895 = vrot.slane %v894, 1
        %v896 = vadd.f32 %v894, %v895
        %v897 = vsel %vm196, %v524, 0.0
        %v898 = vsel %vm196, %v525, 0.0
        %v899 = vadd.f32 %v897, %v898
        %v900 = vrot.slane %v899, 4
        %v901 = vadd.f32 %v899, %v900
        %v902 = vrot.slane %v901, 2
        %v903 = vadd.f32 %v901, %v902
        %v904 = vrot.slane %v903, 1
        %v905 = vadd.f32 %v903, %v904
        %v906 = vsel %vm196, %v526, 0.0
        %v907 = vsel %vm196, %v527, 0.0
        %v908 = vadd.f32 %v906, %v907
        %v909 = vrot.slane %v908, 4
        %v910 = vadd.f32 %v908, %v909
        %v911 = vrot.slane %v910, 2
        %v912 = vadd.f32 %v910, %v911
        %v913 = vrot.slane %v912, 1
        %v914 = vadd.f32 %v912, %v913
        %v915 = vsel %vm196, %v528, 0.0
        %v916 = vsel %vm196, %v529, 0.0
        %v917 = vadd.f32 %v915, %v916
        %v918 = vrot.slane %v917, 4
        %v919 = vadd.f32 %v917, %v918
        %v920 = vrot.slane %v919, 2
        %v921 = vadd.f32 %v919, %v920
        %v922 = vrot.slane %v921, 1
        %v923 = vadd.f32 %v921, %v922
        %v924 = vsel %vm196, %v530, 0.0
        %v925 = vsel %vm196, %v531, 0.0
        %v926 = vadd.f32 %v924, %v925
        %v927 = vrot.slane %v926, 4
        %v928 = vadd.f32 %v926, %v927
        %v929 = vrot.slane %v928, 2
        %v930 = vadd.f32 %v928, %v929
        %v931 = vrot.slane %v930, 1
        %v932 = vadd.f32 %v930, %v931
        %v933 = vsel %vm196, %v532, 0.0
        %v934 = vsel %vm196, %v533, 0.0
        %v935 = vadd.f32 %v933, %v934
        %v936 = vrot.slane %v935, 4
        %v937 = vadd.f32 %v935, %v936
        %v938 = vrot.slane %v937, 2
        %v939 = vadd.f32 %v937, %v938
        %v940 = vrot.slane %v939, 1
        %v941 = vadd.f32 %v939, %v940
        %v942 = vsel %vm196, %v534, 0.0
        %v943 = vsel %vm196, %v535, 0.0
        %v944 = vadd.f32 %v942, %v943
        %v945 = vrot.slane %v944, 4
        %v946 = vadd.f32 %v944, %v945
        %v947 = vrot.slane %v946, 2
        %v948 = vadd.f32 %v946, %v947
        %v949 = vrot.slane %v948, 1
        %v950 = vadd.f32 %v948, %v949
        %v951 = vsel %vm196, %v536, 0.0
        %v952 = vsel %vm196, %v537, 0.0
        %v953 = vadd.f32 %v951, %v952
        %v954 = vrot.slane %v953, 4
        %v955 = vadd.f32 %v953, %v954
        %v956 = vrot.slane %v955, 2
        %v957 = vadd.f32 %v955, %v956
        %v958 = vrot.slane %v957, 1
        %v959 = vadd.f32 %v957, %v958
        %v960 = vsel %vm196, %v538, 0.0
        %v961 = vsel %vm196, %v539, 0.0
        %v962 = vadd.f32 %v960, %v961
        %v963 = vrot.slane %v962, 4
        %v964 = vadd.f32 %v962, %v963
        %v965 = vrot.slane %v964, 2
        %v966 = vadd.f32 %v964, %v965
        %v967 = vrot.slane %v966, 1
        %v968 = vadd.f32 %v966, %v967
        %v969 = vsel %vm196, %v540, 0.0
        %v970 = vsel %vm196, %v541, 0.0
        %v971 = vadd.f32 %v969, %v970
        %v972 = vrot.slane %v971, 4
        %v973 = vadd.f32 %v971, %v972
        %v974 = vrot.slane %v973, 2
        %v975 = vadd.f32 %v973, %v974
        %v976 = vrot.slane %v975, 1
        %v977 = vadd.f32 %v975, %v976
        %v978 = vsel %vm196, %v542, 0.0
        %v979 = vsel %vm196, %v543, 0.0
        %v980 = vadd.f32 %v978, %v979
        %v981 = vrot.slane %v980, 4
        %v982 = vadd.f32 %v980, %v981
        %v983 = vrot.slane %v982, 2
        %v984 = vadd.f32 %v982, %v983
        %v985 = vrot.slane %v984, 1
        %v986 = vadd.f32 %v984, %v985
        %v987 = vsel %vm196, %v544, 0.0
        %v988 = vsel %vm196, %v545, 0.0
        %v989 = vadd.f32 %v987, %v988
        %v990 = vrot.slane %v989, 4
        %v991 = vadd.f32 %v989, %v990
        %v992 = vrot.slane %v991, 2
        %v993 = vadd.f32 %v991, %v992
        %v994 = vrot.slane %v993, 1
        %v995 = vadd.f32 %v993, %v994
        %v996 = vsel %vm196, %v546, 0.0
        %v997 = vsel %vm196, %v547, 0.0
        %v998 = vadd.f32 %v996, %v997
        %v999 = vrot.slane %v998, 4
        %v1000 = vadd.f32 %v998, %v999
        %v1001 = vrot.slane %v1000, 2
        %v1002 = vadd.f32 %v1000, %v1001
        %v1003 = vrot.slane %v1002, 1
        %v1004 = vadd.f32 %v1002, %v1003
        %v1005 = vsel %vm196, %v548, 0.0
        %v1006 = vsel %vm196, %v549, 0.0
        %v1007 = vadd.f32 %v1005, %v1006
        %v1008 = vrot.slane %v1007, 4
        %v1009 = vadd.f32 %v1007, %v1008
        %v1010 = vrot.slane %v1009, 2
        %v1011 = vadd.f32 %v1009, %v1010
        %v1012 = vrot.slane %v1011, 1
        %v1013 = vadd.f32 %v1011, %v1012
        %v1014 = vsel %vm196, %v550, 0.0
        %v1015 = vsel %vm196, %v551, 0.0
        %v1016 = vadd.f32 %v1014, %v1015
        %v1017 = vrot.slane %v1016, 4
        %v1018 = vadd.f32 %v1016, %v1017
        %v1019 = vrot.slane %v1018, 2
        %v1020 = vadd.f32 %v1018, %v1019
        %v1021 = vrot.slane %v1020, 1
        %v1022 = vadd.f32 %v1020, %v1021
        %v1023 = vsel %vm196, %v552, 0.0
        %v1024 = vsel %vm196, %v553, 0.0
        %v1025 = vadd.f32 %v1023, %v1024
        %v1026 = vrot.slane %v1025, 4
        %v1027 = vadd.f32 %v1025, %v1026
        %v1028 = vrot.slane %v1027, 2
        %v1029 = vadd.f32 %v1027, %v1028
        %v1030 = vrot.slane %v1029, 1
        %v1031 = vadd.f32 %v1029, %v1030
        %v1032 = vsel %vm196, %v554, 0.0
        %v1033 = vsel %vm196, %v555, 0.0
        %v1034 = vadd.f32 %v1032, %v1033
        %v1035 = vrot.slane %v1034, 4
        %v1036 = vadd.f32 %v1034, %v1035
        %v1037 = vrot.slane %v1036, 2
        %v1038 = vadd.f32 %v1036, %v1037
        %v1039 = vrot.slane %v1038, 1
        %v1040 = vadd.f32 %v1038, %v1039
        %v1041 = vsel %vm196, %v556, 0.0
        %v1042 = vsel %vm196, %v557, 0.0
        %v1043 = vadd.f32 %v1041, %v1042
        %v1044 = vrot.slane %v1043, 4
        %v1045 = vadd.f32 %v1043, %v1044
        %v1046 = vrot.slane %v1045, 2
        %v1047 = vadd.f32 %v1045, %v1046
        %v1048 = vrot.slane %v1047, 1
        %v1049 = vadd.f32 %v1047, %v1048
        %v1050 = vsel %vm196, %v558, 0.0
        %v1051 = vsel %vm196, %v559, 0.0
        %v1052 = vadd.f32 %v1050, %v1051
        %v1053 = vrot.slane %v1052, 4
        %v1054 = vadd.f32 %v1052, %v1053
        %v1055 = vrot.slane %v1054, 2
        %v1056 = vadd.f32 %v1054, %v1055
        %v1057 = vrot.slane %v1056, 1
        %v1058 = vadd.f32 %v1056, %v1057
        %v1059 = vsel %vm196, %v560, 0.0
        %v1060 = vsel %vm196, %v561, 0.0
        %v1061 = vadd.f32 %v1059, %v1060
        %v1062 = vrot.slane %v1061, 4
        %v1063 = vadd.f32 %v1061, %v1062
        %v1064 = vrot.slane %v1063, 2
        %v1065 = vadd.f32 %v1063, %v1064
        %v1066 = vrot.slane %v1065, 1
        %v1067 = vadd.f32 %v1065, %v1066
        %v1068 = vsel %vm196, %v562, 0.0
        %v1069 = vsel %vm196, %v563, 0.0
        %v1070 = vadd.f32 %v1068, %v1069
        %v1071 = vrot.slane %v1070, 4
        %v1072 = vadd.f32 %v1070, %v1071
        %v1073 = vrot.slane %v1072, 2
        %v1074 = vadd.f32 %v1072, %v1073
        %v1075 = vrot.slane %v1074, 1
        %v1076 = vadd.f32 %v1074, %v1075
        %v1077 = vsel %vm196, %v564, 0.0
        %v1078 = vsel %vm196, %v565, 0.0
        %v1079 = vadd.f32 %v1077, %v1078
        %v1080 = vrot.slane %v1079, 4
        %v1081 = vadd.f32 %v1079, %v1080
        %v1082 = vrot.slane %v1081, 2
        %v1083 = vadd.f32 %v1081, %v1082
        %v1084 = vrot.slane %v1083, 1
        %v1085 = vadd.f32 %v1083, %v1084
        %v1086 = vsel %vm196, %v566, 0.0
        %v1087 = vsel %vm196, %v567, 0.0
        %v1088 = vadd.f32 %v1086, %v1087
        %v1089 = vrot.slane %v1088, 4
        %v1090 = vadd.f32 %v1088, %v1089
        %v1091 = vrot.slane %v1090, 2
        %v1092 = vadd.f32 %v1090, %v1091
        %v1093 = vrot.slane %v1092, 1
        %v1094 = vadd.f32 %v1092, %v1093
        %v1095 = vsel %vm196, %v568, 0.0
        %v1096 = vsel %vm196, %v569, 0.0
        %v1097 = vadd.f32 %v1095, %v1096
        %v1098 = vrot.slane %v1097, 4
        %v1099 = vadd.f32 %v1097, %v1098
        %v1100 = vrot.slane %v1099, 2
        %v1101 = vadd.f32 %v1099, %v1100
        %v1102 = vrot.slane %v1101, 1
        %v1103 = vadd.f32 %v1101, %v1102
        %v1104 = vsel %vm196, %v570, 0.0
        %v1105 = vsel %vm196, %v571, 0.0
        %v1106 = vadd.f32 %v1104, %v1105
        %v1107 = vrot.slane %v1106, 4
        %v1108 = vadd.f32 %v1106, %v1107
        %v1109 = vrot.slane %v1108, 2
        %v1110 = vadd.f32 %v1108, %v1109
        %v1111 = vrot.slane %v1110, 1
        %v1112 = vadd.f32 %v1110, %v1111
        %v1113 = vsel %vm196, %v572, 0.0
        %v1114 = vsel %vm196, %v573, 0.0
        %v1115 = vadd.f32 %v1113, %v1114
        %v1116 = vrot.slane %v1115, 4
        %v1117 = vadd.f32 %v1115, %v1116
        %v1118 = vrot.slane %v1117, 2
        %v1119 = vadd.f32 %v1117, %v1118
        %v1120 = vrot.slane %v1119, 1
        %v1121 = vadd.f32 %v1119, %v1120
        %v1122 = vsel %vm196, %v574, 0.0
        %v1123 = vsel %vm196, %v575, 0.0
        %v1124 = vadd.f32 %v1122, %v1123
        %v1125 = vrot.slane %v1124, 4
        %v1126 = vadd.f32 %v1124, %v1125
        %v1127 = vrot.slane %v1126, 2
        %v1128 = vadd.f32 %v1126, %v1127
        %v1129 = vrot.slane %v1128, 1
        %v1130 = vadd.f32 %v1128, %v1129
        %v1131 = vsel %vm196, %v576, 0.0
        %v1132 = vsel %vm196, %v577, 0.0
        %v1133 = vadd.f32 %v1131, %v1132
        %v1134 = vrot.slane %v1133, 4
        %v1135 = vadd.f32 %v1133, %v1134
        %v1136 = vrot.slane %v1135, 2
        %v1137 = vadd.f32 %v1135, %v1136
        %v1138 = vrot.slane %v1137, 1
        %v1139 = vadd.f32 %v1137, %v1138
        %v1140 = vsel %vm196, %v578, 0.0
        %v1141 = vsel %vm196, %v579, 0.0
        %v1142 = vadd.f32 %v1140, %v1141
        %v1143 = vrot.slane %v1142, 4
        %v1144 = vadd.f32 %v1142, %v1143
        %v1145 = vrot.slane %v1144, 2
        %v1146 = vadd.f32 %v1144, %v1145
        %v1147 = vrot.slane %v1146, 1
        %v1148 = vadd.f32 %v1146, %v1147
        %v1149 = vsel %vm196, %v580, 0.0
        %v1150 = vsel %vm196, %v581, 0.0
        %v1151 = vadd.f32 %v1149, %v1150
        %v1152 = vrot.slane %v1151, 4
        %v1153 = vadd.f32 %v1151, %v1152
        %v1154 = vrot.slane %v1153, 2
        %v1155 = vadd.f32 %v1153, %v1154
        %v1156 = vrot.slane %v1155, 1
        %v1157 = vadd.f32 %v1155, %v1156
        %v1158 = vsel %vm196, %v590, -inf
        %v1159 = vsel %vm196, %v599, -inf
        %v1160 = vmax.f32 %v1158, %v1159
        %v1161 = vsel %vm196, %v608, -inf
        %v1162 = vmax.f32 %v1160, %v1161
        %v1163 = vsel %vm196, %v617, -inf
        %v1164 = vmax.f32 %v1162, %v1163
        %v1165 = vsel %vm196, %v626, -inf
        %v1166 = vmax.f32 %v1164, %v1165
        %v1167 = vsel %vm196, %v635, -inf
        %v1168 = vmax.f32 %v1166, %v1167
        %v1169 = vsel %vm196, %v644, -inf
        %v1170 = vmax.f32 %v1168, %v1169
        %v1171 = vsel %vm196, %v653, -inf
        %v1172 = vmax.f32 %v1170, %v1171
        %v1173 = vsel %vm196, %v662, -inf
        %v1174 = vsel %vm196, %v671, -inf
        %v1175 = vmax.f32 %v1173, %v1174
        %v1176 = vsel %vm196, %v680, -inf
        %v1177 = vmax.f32 %v1175, %v1176
        %v1178 = vsel %vm196, %v689, -inf
        %v1179 = vmax.f32 %v1177, %v1178
        %v1180 = vsel %vm196, %v698, -inf
        %v1181 = vmax.f32 %v1179, %v1180
        %v1182 = vsel %vm196, %v707, -inf
        %v1183 = vmax.f32 %v1181, %v1182
        %v1184 = vsel %vm196, %v716, -inf
        %v1185 = vmax.f32 %v1183, %v1184
        %v1186 = vsel %vm196, %v725, -inf
        %v1187 = vmax.f32 %v1185, %v1186
        %v1188 = vsel %vm196, %v734, -inf
        %v1189 = vsel %vm196, %v743, -inf
        %v1190 = vmax.f32 %v1188, %v1189
        %v1191 = vsel %vm196, %v752, -inf
        %v1192 = vmax.f32 %v1190, %v1191
        %v1193 = vsel %vm196, %v761, -inf
        %v1194 = vmax.f32 %v1192, %v1193
        %v1195 = vsel %vm196, %v770, -inf
        %v1196 = vmax.f32 %v1194, %v1195
        %v1197 = vsel %vm196, %v779, -inf
        %v1198 = vmax.f32 %v1196, %v1197
        %v1199 = vsel %vm196, %v788, -inf
        %v1200 = vmax.f32 %v1198, %v1199
        %v1201 = vsel %vm196, %v797, -inf
        %v1202 = vmax.f32 %v1200, %v1201
        %v1203 = vsel %vm196, %v806, -inf
        %v1204 = vsel %vm196, %v815, -inf
        %v1205 = vmax.f32 %v1203, %v1204
        %v1206 = vsel %vm196, %v824, -inf
        %v1207 = vmax.f32 %v1205, %v1206
        %v1208 = vsel %vm196, %v833, -inf
        %v1209 = vmax.f32 %v1207, %v1208
        %v1210 = vsel %vm196, %v842, -inf
        %v1211 = vmax.f32 %v1209, %v1210
        %v1212 = vsel %vm196, %v851, -inf
        %v1213 = vmax.f32 %v1211, %v1212
        %v1214 = vsel %vm196, %v860, -inf
        %v1215 = vmax.f32 %v1213, %v1214
        %v1216 = vsel %vm196, %v869, -inf
        %v1217 = vmax.f32 %v1215, %v1216
        %v1218 = vsel %vm196, %v878, -inf
        %v1219 = vsel %vm196, %v887, -inf
        %v1220 = vmax.f32 %v1218, %v1219
        %v1221 = vsel %vm196, %v896, -inf
        %v1222 = vmax.f32 %v1220, %v1221
        %v1223 = vsel %vm196, %v905, -inf
        %v1224 = vmax.f32 %v1222, %v1223
        %v1225 = vsel %vm196, %v914, -inf
        %v1226 = vmax.f32 %v1224, %v1225
        %v1227 = vsel %vm196, %v923, -inf
        %v1228 = vmax.f32 %v1226, %v1227
        %v1229 = vsel %vm196, %v932, -inf
        %v1230 = vmax.f32 %v1228, %v1229
        %v1231 = vsel %vm196, %v941, -inf
        %v1232 = vmax.f32 %v1230, %v1231
        %v1233 = vsel %vm196, %v950, -inf
        %v1234 = vsel %vm196, %v959, -inf
        %v1235 = vmax.f32 %v1233, %v1234
        %v1236 = vsel %vm196, %v968, -inf
        %v1237 = vmax.f32 %v1235, %v1236
        %v1238 = vsel %vm196, %v977, -inf
        %v1239 = vmax.f32 %v1237, %v1238
        %v1240 = vsel %vm196, %v986, -inf
        %v1241 = vmax.f32 %v1239, %v1240
        %v1242 = vsel %vm196, %v995, -inf
        %v1243 = vmax.f32 %v1241, %v1242
        %v1244 = vsel %vm196, %v1004, -inf
        %v1245 = vmax.f32 %v1243, %v1244
        %v1246 = vsel %vm196, %v1013, -inf
        %v1247 = vmax.f32 %v1245, %v1246
        %v1248 = vsel %vm196, %v1022, -inf
        %v1249 = vsel %vm196, %v1031, -inf
        %v1250 = vmax.f32 %v1248, %v1249
        %v1251 = vsel %vm196, %v1040, -inf
        %v1252 = vmax.f32 %v1250, %v1251
        %v1253 = vsel %vm196, %v1049, -inf
        %v1254 = vmax.f32 %v1252, %v1253
        %v1255 = vsel %vm196, %v1058, -inf
        %v1256 = vmax.f32 %v1254, %v1255
        %v1257 = vsel %vm196, %v1067, -inf
        %v1258 = vmax.f32 %v1256, %v1257
        %v1259 = vsel %vm196, %v1076, -inf
        %v1260 = vmax.f32 %v1258, %v1259
        %v1261 = vsel %vm196, %v1085, -inf
        %v1262 = vmax.f32 %v1260, %v1261
        %v1263 = vsel %vm196, %v1094, -inf
        %v1264 = vsel %vm196, %v1103, -inf
        %v1265 = vmax.f32 %v1263, %v1264
        %v1266 = vsel %vm196, %v1112, -inf
        %v1267 = vmax.f32 %v1265, %v1266
        %v1268 = vsel %vm196, %v1121, -inf
        %v1269 = vmax.f32 %v1267, %v1268
        %v1270 = vsel %vm196, %v1130, -inf
        %v1271 = vmax.f32 %v1269, %v1270
        %v1272 = vsel %vm196, %v1139, -inf
        %v1273 = vmax.f32 %v1271, %v1272
        %v1274 = vsel %vm196, %v1148, -inf
        %v1275 = vmax.f32 %v1273, %v1274
        %v1276 = vsel %vm196, %v1157, -inf
        %v1277 = vmax.f32 %v1275, %v1276
        %v1278 = vsub.f32 %v590, %v1172
        %v1279 = vsub.f32 %v599, %v1172
        %v1280 = vsub.f32 %v608, %v1172
        %v1281 = vsub.f32 %v617, %v1172
        %v1282 = vsub.f32 %v626, %v1172
        %v1283 = vsub.f32 %v635, %v1172
        %v1284 = vsub.f32 %v644, %v1172
        %v1285 = vsub.f32 %v653, %v1172
        %v1286 = vsub.f32 %v662, %v1187
        %v1287 = vsub.f32 %v671, %v1187
        %v1288 = vsub.f32 %v680, %v1187
        %v1289 = vsub.f32 %v689, %v1187
        %v1290 = vsub.f32 %v698, %v1187
        %v1291 = vsub.f32 %v707, %v1187
        %v1292 = vsub.f32 %v716, %v1187
        %v1293 = vsub.f32 %v725, %v1187
        %v1294 = vsub.f32 %v734, %v1202
        %v1295 = vsub.f32 %v743, %v1202
        %v1296 = vsub.f32 %v752, %v1202
        %v1297 = vsub.f32 %v761, %v1202
        %v1298 = vsub.f32 %v770, %v1202
        %v1299 = vsub.f32 %v779, %v1202
        %v1300 = vsub.f32 %v788, %v1202
        %v1301 = vsub.f32 %v797, %v1202
        %v1302 = vsub.f32 %v806, %v1217
        %v1303 = vsub.f32 %v815, %v1217
        %v1304 = vsub.f32 %v824, %v1217
        %v1305 = vsub.f32 %v833, %v1217
        %v1306 = vsub.f32 %v842, %v1217
        %v1307 = vsub.f32 %v851, %v1217
        %v1308 = vsub.f32 %v860, %v1217
        %v1309 = vsub.f32 %v869, %v1217
        %v1310 = vsub.f32 %v878, %v1232
        %v1311 = vsub.f32 %v887, %v1232
        %v1312 = vsub.f32 %v896, %v1232
        %v1313 = vsub.f32 %v905, %v1232
        %v1314 = vsub.f32 %v914, %v1232
        %v1315 = vsub.f32 %v923, %v1232
        %v1316 = vsub.f32 %v932, %v1232
        %v1317 = vsub.f32 %v941, %v1232
        %v1318 = vsub.f32 %v950, %v1247
        %v1319 = vsub.f32 %v959, %v1247
        %v1320 = vsub.f32 %v968, %v1247
        %v1321 = vsub.f32 %v977, %v1247
        %v1322 = vsub.f32 %v986, %v1247
        %v1323 = vsub.f32 %v995, %v1247
        %v1324 = vsub.f32 %v1004, %v1247
        %v1325 = vsub.f32 %v1013, %v1247
        %v1326 = vsub.f32 %v1022, %v1262
        %v1327 = vsub.f32 %v1031, %v1262
        %v1328 = vsub.f32 %v1040, %v1262
        %v1329 = vsub.f32 %v1049, %v1262
        %v1330 = vsub.f32 %v1058, %v1262
        %v1331 = vsub.f32 %v1067, %v1262
        %v1332 = vsub.f32 %v1076, %v1262
        %v1333 = vsub.f32 %v1085, %v1262
        %v1334 = vsub.f32 %v1094, %v1277
        %v1335 = vsub.f32 %v1103, %v1277
        %v1336 = vsub.f32 %v1112, %v1277
        %v1337 = vsub.f32 %v1121, %v1277
        %v1338 = vsub.f32 %v1130, %v1277
        %v1339 = vsub.f32 %v1139, %v1277
        %v1340 = vsub.f32 %v1148, %v1277
        %v1341 = vsub.f32 %v1157, %v1277
        %v1342 = vmul.f32 %v1278, 1.442695
        %v1343 = vpow.pop %v1342
        %v1344 = vmul.f32 %v1279, 1.442695
        %v1345 = vpow.pop %v1344
        %v1346 = vmul.f32 %v1280, 1.442695
        %v1347 = vpow.pop %v1346
        %v1348 = vmul.f32 %v1281, 1.442695
        %v1349 = vpow.pop %v1348
        %v1350 = vmul.f32 %v1282, 1.442695
        %v1351 = vpow.pop %v1350
        %v1352 = vmul.f32 %v1283, 1.442695
        %v1353 = vpow.pop %v1352
        %v1354 = vmul.f32 %v1284, 1.442695
        %v1355 = vpow.pop %v1354
        %v1356 = vmul.f32 %v1285, 1.442695
        %v1357 = vpow.pop %v1356
        %v1358 = vmul.f32 %v1286, 1.442695
        %v1359 = vpow.pop %v1358
        %v1360 = vmul.f32 %v1287, 1.442695
        %v1361 = vpow.pop %v1360
        %v1362 = vmul.f32 %v1288, 1.442695
        %v1363 = vpow.pop %v1362
        %v1364 = vmul.f32 %v1289, 1.442695
        %v1365 = vpow.pop %v1364
        %v1366 = vmul.f32 %v1290, 1.442695
        %v1367 = vpow.pop %v1366
        %v1368 = vmul.f32 %v1291, 1.442695
        %v1369 = vpow.pop %v1368
        %v1370 = vmul.f32 %v1292, 1.442695
        %v1371 = vpow.pop %v1370
        %v1372 = vmul.f32 %v1293, 1.442695
        %v1373 = vpow.pop %v1372
        %v1374 = vmul.f32 %v1294, 1.442695
        %v1375 = vpow.pop %v1374
        %v1376 = vmul.f32 %v1295, 1.442695
        %v1377 = vpow.pop %v1376
        %v1378 = vmul.f32 %v1296, 1.442695
        %v1379 = vpow.pop %v1378
        %v1380 = vmul.f32 %v1297, 1.442695
        %v1381 = vpow.pop %v1380
        %v1382 = vmul.f32 %v1298, 1.442695
        %v1383 = vpow.pop %v1382
        %v1384 = vmul.f32 %v1299, 1.442695
        %v1385 = vpow.pop %v1384
        %v1386 = vmul.f32 %v1300, 1.442695
        %v1387 = vpow.pop %v1386
        %v1388 = vmul.f32 %v1301, 1.442695
        %v1389 = vpow.pop %v1388
        %v1390 = vmul.f32 %v1302, 1.442695
        %v1391 = vpow.pop %v1390
        %v1392 = vmul.f32 %v1303, 1.442695
        %v1393 = vpow.pop %v1392
        %v1394 = vmul.f32 %v1304, 1.442695
        %v1395 = vpow.pop %v1394
        %v1396 = vmul.f32 %v1305, 1.442695
        %v1397 = vpow.pop %v1396
        %v1398 = vmul.f32 %v1306, 1.442695
        %v1399 = vpow.pop %v1398
        %v1400 = vmul.f32 %v1307, 1.442695
        %v1401 = vpow.pop %v1400
        %v1402 = vmul.f32 %v1308, 1.442695
        %v1403 = vpow.pop %v1402
        %v1404 = vmul.f32 %v1309, 1.442695
        %v1405 = vpow.pop %v1404
        %v1406 = vmul.f32 %v1310, 1.442695
        %v1407 = vpow.pop %v1406
        %v1408 = vmul.f32 %v1311, 1.442695
        %v1409 = vpow.pop %v1408
        %v1410 = vmul.f32 %v1312, 1.442695
        %v1411 = vpow.pop %v1410
        %v1412 = vmul.f32 %v1313, 1.442695
        %v1413 = vpow.pop %v1412
        %v1414 = vmul.f32 %v1314, 1.442695
        %v1415 = vpow.pop %v1414
        %v1416 = vmul.f32 %v1315, 1.442695
        %v1417 = vpow.pop %v1416
        %v1418 = vmul.f32 %v1316, 1.442695
        %v1419 = vpow.pop %v1418
        %v1420 = vmul.f32 %v1317, 1.442695
        %v1421 = vpow.pop %v1420
        %v1422 = vmul.f32 %v1318, 1.442695
        %v1423 = vpow.pop %v1422
        %v1424 = vmul.f32 %v1319, 1.442695
        %v1425 = vpow.pop %v1424
        %v1426 = vmul.f32 %v1320, 1.442695
        %v1427 = vpow.pop %v1426
        %v1428 = vmul.f32 %v1321, 1.442695
        %v1429 = vpow.pop %v1428
        %v1430 = vmul.f32 %v1322, 1.442695
        %v1431 = vpow.pop %v1430
        %v1432 = vmul.f32 %v1323, 1.442695
        %v1433 = vpow.pop %v1432
        %v1434 = vmul.f32 %v1324, 1.442695
        %v1435 = vpow.pop %v1434
        %v1436 = vmul.f32 %v1325, 1.442695
        %v1437 = vpow.pop %v1436
        %v1438 = vmul.f32 %v1326, 1.442695
        %v1439 = vpow.pop %v1438
        %v1440 = vmul.f32 %v1327, 1.442695
        %v1441 = vpow.pop %v1440
        %v1442 = vmul.f32 %v1328, 1.442695
        %v1443 = vpow.pop %v1442
        %v1444 = vmul.f32 %v1329, 1.442695
        %v1445 = vpow.pop %v1444
        %v1446 = vmul.f32 %v1330, 1.442695
        %v1447 = vpow.pop %v1446
        %v1448 = vmul.f32 %v1331, 1.442695
        %v1449 = vpow.pop %v1448
        %v1450 = vmul.f32 %v1332, 1.442695
        %v1451 = vpow.pop %v1450
        %v1452 = vmul.f32 %v1333, 1.442695
        %v1453 = vpow.pop %v1452
        %v1454 = vmul.f32 %v1334, 1.442695
        %v1455 = vpow.pop %v1454
        %v1456 = vmul.f32 %v1335, 1.442695
        %v1457 = vpow.pop %v1456
        %v1458 = vmul.f32 %v1336, 1.442695
        %v1459 = vpow.pop %v1458
        %v1460 = vmul.f32 %v1337, 1.442695
        %v1461 = vpow.pop %v1460
        %v1462 = vmul.f32 %v1338, 1.442695
        %v1463 = vpow.pop %v1462
        %v1464 = vmul.f32 %v1339, 1.442695
        %v1465 = vpow.pop %v1464
        %v1466 = vmul.f32 %v1340, 1.442695
        %v1467 = vpow.pop %v1466
        %v1468 = vmul.f32 %v1341, 1.442695
        %v1469 = vpow.pop %v1468
        %v1534 = vrot.slane %v1345, 7
        %vm1535 = vcmask 1041409
        %v1536 = vsel %vm1535, %v1534, %v1343
        %v1537 = vrot.slane %v1347, 6
        %vm1538 = vcmask 1042434
        %v1539 = vsel %vm1538, %v1537, %v1536
        %v1540 = vrot.slane %v1349, 5
        %vm1541 = vcmask 1043459
        %v1542 = vsel %vm1541, %v1540, %v1539
        %v1543 = vrot.slane %v1351, 4
        %vm1544 = vcmask 1044484
        %v1545 = vsel %vm1544, %v1543, %v1542
        %v1546 = vrot.slane %v1353, 3
        %vm1547 = vcmask 1045509
        %v1548 = vsel %vm1547, %v1546, %v1545
        %v1549 = vrot.slane %v1355, 2
        %vm1550 = vcmask 1046534
        %v1551 = vsel %vm1550, %v1549, %v1548
        %v1552 = vrot.slane %v1357, 1
        %vm1553 = vcmask 1047559
        %v1554 = vsel %vm1553, %v1552, %v1551
        %v1555 = vrot.slane %v1361, 7
        %v1556 = vsel %vm1535, %v1555, %v1359
        %v1557 = vrot.slane %v1363, 6
        %v1558 = vsel %vm1538, %v1557, %v1556
        %v1559 = vrot.slane %v1365, 5
        %v1560 = vsel %vm1541, %v1559, %v1558
        %v1561 = vrot.slane %v1367, 4
        %v1562 = vsel %vm1544, %v1561, %v1560
        %v1563 = vrot.slane %v1369, 3
        %v1564 = vsel %vm1547, %v1563, %v1562
        %v1565 = vrot.slane %v1371, 2
        %v1566 = vsel %vm1550, %v1565, %v1564
        %v1567 = vrot.slane %v1373, 1
        %v1568 = vsel %vm1553, %v1567, %v1566
        %v1569 = vrot.slane %v1377, 7
        %v1570 = vsel %vm1535, %v1569, %v1375
        %v1571 = vrot.slane %v1379, 6
        %v1572 = vsel %vm1538, %v1571, %v1570
        %v1573 = vrot.slane %v1381, 5
        %v1574 = vsel %vm1541, %v1573, %v1572
        %v1575 = vrot.slane %v1383, 4
        %v1576 = vsel %vm1544, %v1575, %v1574
        %v1577 = vrot.slane %v1385, 3
        %v1578 = vsel %vm1547, %v1577, %v1576
        %v1579 = vrot.slane %v1387, 2
        %v1580 = vsel %vm1550, %v1579, %v1578
        %v1581 = vrot.slane %v1389, 1
        %v1582 = vsel %vm1553, %v1581, %v1580
        %v1583 = vrot.slane %v1393, 7
        %v1584 = vsel %vm1535, %v1583, %v1391
        %v1585 = vrot.slane %v1395, 6
        %v1586 = vsel %vm1538, %v1585, %v1584
        %v1587 = vrot.slane %v1397, 5
        %v1588 = vsel %vm1541, %v1587, %v1586
        %v1589 = vrot.slane %v1399, 4
        %v1590 = vsel %vm1544, %v1589, %v1588
        %v1591 = vrot.slane %v1401, 3
        %v1592 = vsel %vm1547, %v1591, %v1590
        %v1593 = vrot.slane %v1403, 2
        %v1594 = vsel %vm1550, %v1593, %v1592
        %v1595 = vrot.slane %v1405, 1
        %v1596 = vsel %vm1553, %v1595, %v1594
        %v1597 = vrot.slane %v1409, 7
        %v1598 = vsel %vm1535, %v1597, %v1407
        %v1599 = vrot.slane %v1411, 6
        %v1600 = vsel %vm1538, %v1599, %v1598
        %v1601 = vrot.slane %v1413, 5
        %v1602 = vsel %vm1541, %v1601, %v1600
        %v1603 = vrot.slane %v1415, 4
        %v1604 = vsel %vm1544, %v1603, %v1602
        %v1605 = vrot.slane %v1417, 3
        %v1606 = vsel %vm1547, %v1605, %v1604
        %v1607 = vrot.slane %v1419, 2
        %v1608 = vsel %vm1550, %v1607, %v1606
        %v1609 = vrot.slane %v1421, 1
        %v1610 = vsel %vm1553, %v1609, %v1608
        %v1611 = vrot.slane %v1425, 7
        %v1612 = vsel %vm1535, %v1611, %v1423
        %v1613 = vrot.slane %v1427, 6
        %v1614 = vsel %vm1538, %v1613, %v1612
        %v1615 = vrot.slane %v1429, 5
        %v1616 = vsel %vm1541, %v1615, %v1614
        %v1617 = vrot.slane %v1431, 4
        %v1618 = vsel %vm1544, %v1617, %v1616
        %v1619 = vrot.slane %v1433, 3
        %v1620 = vsel %vm1547, %v1619, %v1618
        %v1621 = vrot.slane %v1435, 2
        %v1622 = vsel %vm1550, %v1621, %v1620
        %v1623 = vrot.slane %v1437, 1
        %v1624 = vsel %vm1553, %v1623, %v1622
        %v1625 = vrot.slane %v1441, 7
        %v1626 = vsel %vm1535, %v1625, %v1439
        %v1627 = vrot.slane %v1443, 6
        %v1628 = vsel %vm1538, %v1627, %v1626
        %v1629 = vrot.slane %v1445, 5
        %v1630 = vsel %vm1541, %v1629, %v1628
        %v1631 = vrot.slane %v1447, 4
        %v1632 = vsel %vm1544, %v1631, %v1630
        %v1633 = vrot.slane %v1449, 3
        %v1634 = vsel %vm1547, %v1633, %v1632
        %v1635 = vrot.slane %v1451, 2
        %v1636 = vsel %vm1550, %v1635, %v1634
        %v1637 = vrot.slane %v1453, 1
        %v1638 = vsel %vm1553, %v1637, %v1636
        %v1639 = vrot.slane %v1457, 7
        %v1640 = vsel %vm1535, %v1639, %v1455
        %v1641 = vrot.slane %v1459, 6
        %v1642 = vsel %vm1538, %v1641, %v1640
        %v1643 = vrot.slane %v1461, 5
        %v1644 = vsel %vm1541, %v1643, %v1642
        %v1645 = vrot.slane %v1463, 4
        %v1646 = vsel %vm1544, %v1645, %v1644
        %v1647 = vrot.slane %v1465, 3
        %v1648 = vsel %vm1547, %v1647, %v1646
        %v1649 = vrot.slane %v1467, 2
        %v1650 = vsel %vm1550, %v1649, %v1648
        %v1651 = vrot.slane %v1469, 1
        %v1652 = vsel %vm1553, %v1651, %v1650
        %v1661 = vsel %vm196, %v1554, 0.0
        %v1662 = vrot.slane %v1661, 4
        %v1663 = vadd.f32 %v1661, %v1662
        %v1664 = vrot.slane %v1663, 2
        %v1665 = vadd.f32 %v1663, %v1664
        %v1666 = vrot.slane %v1665, 1
        %v1667 = vadd.f32 %v1665, %v1666
        %v1668 = vsel %vm196, %v1568, 0.0
        %v1669 = vrot.slane %v1668, 4
        %v1670 = vadd.f32 %v1668, %v1669
        %v1671 = vrot.slane %v1670, 2
        %v1672 = vadd.f32 %v1670, %v1671
        %v1673 = vrot.slane %v1672, 1
        %v1674 = vadd.f32 %v1672, %v1673
        %v1675 = vsel %vm196, %v1582, 0.0
        %v1676 = vrot.slane %v1675, 4
        %v1677 = vadd.f32 %v1675, %v1676
        %v1678 = vrot.slane %v1677, 2
        %v1679 = vadd.f32 %v1677, %v1678
        %v1680 = vrot.slane %v1679, 1
        %v1681 = vadd.f32 %v1679, %v1680
        %v1682 = vsel %vm196, %v1596, 0.0
        %v1683 = vrot.slane %v1682, 4
        %v1684 = vadd.f32 %v1682, %v1683
        %v1685 = vrot.slane %v1684, 2
        %v1686 = vadd.f32 %v1684, %v1685
        %v1687 = vrot.slane %v1686, 1
        %v1688 = vadd.f32 %v1686, %v1687
        %v1689 = vsel %vm196, %v1610, 0.0
        %v1690 = vrot.slane %v1689, 4
        %v1691 = vadd.f32 %v1689, %v1690
        %v1692 = vrot.slane %v1691, 2
        %v1693 = vadd.f32 %v1691, %v1692
        %v1694 = vrot.slane %v1693, 1
        %v1695 = vadd.f32 %v1693, %v1694
        %v1696 = vsel %vm196, %v1624, 0.0
        %v1697 = vrot.slane %v1696, 4
        %v1698 = vadd.f32 %v1696, %v1697
        %v1699 = vrot.slane %v1698, 2
        %v1700 = vadd.f32 %v1698, %v1699
        %v1701 = vrot.slane %v1700, 1
        %v1702 = vadd.f32 %v1700, %v1701
        %v1703 = vsel %vm196, %v1638, 0.0
        %v1704 = vrot.slane %v1703, 4
        %v1705 = vadd.f32 %v1703, %v1704
        %v1706 = vrot.slane %v1705, 2
        %v1707 = vadd.f32 %v1705, %v1706
        %v1708 = vrot.slane %v1707, 1
        %v1709 = vadd.f32 %v1707, %v1708
        %v1710 = vsel %vm196, %v1652, 0.0
        %v1711 = vrot.slane %v1710, 4
        %v1712 = vadd.f32 %v1710, %v1711
        %v1713 = vrot.slane %v1712, 2
        %v1714 = vadd.f32 %v1712, %v1713
        %v1715 = vrot.slane %v1714, 1
        %v1716 = vadd.f32 %v1714, %v1715
        %v1717 = vlaneseq
        %v1718 = vshrl.u32 %v1717, 7
        %v1719 = vsub.s32 0, %v1718
        %v1720 = vrot.slane %v1667, %v1719
        %v1721 = vlaneseq
        %v1722 = vshrl.u32 %v1721, 7
        %v1723 = vsub.s32 0, %v1722
        %v1724 = vrot.slane %v1674, %v1723
        %v1725 = vlaneseq
        %v1726 = vshrl.u32 %v1725, 7
        %v1727 = vsub.s32 0, %v1726
        %v1728 = vrot.slane %v1681, %v1727
        %v1729 = vlaneseq
        %v1730 = vshrl.u32 %v1729, 7
        %v1731 = vsub.s32 0, %v1730
        %v1732 = vrot.slane %v1688, %v1731
        %v1733 = vlaneseq
        %v1734 = vshrl.u32 %v1733, 7
        %v1735 = vsub.s32 0, %v1734
        %v1736 = vrot.slane %v1695, %v1735
        %v1737 = vlaneseq
        %v1738 = vshrl.u32 %v1737, 7
        %v1739 = vsub.s32 0, %v1738
        %v1740 = vrot.slane %v1702, %v1739
        %v1741 = vlaneseq
        %v1742 = vshrl.u32 %v1741, 7
        %v1743 = vsub.s32 0, %v1742
        %v1744 = vrot.slane %v1709, %v1743
        %v1745 = vlaneseq
        %v1746 = vshrl.u32 %v1745, 7
        %v1747 = vsub.s32 0, %v1746
        %v1748 = vrot.slane %v1716, %v1747
        %v1749 = vrcp.pop %v1720
        %v1750 = vmul.f32 %v1343, %v1749
        %v1751 = vmul.f32 %v1345, %v1749
        %v1752 = vmul.f32 %v1347, %v1749
        %v1753 = vmul.f32 %v1349, %v1749
        %v1754 = vmul.f32 %v1351, %v1749
        %v1755 = vmul.f32 %v1353, %v1749
        %v1756 = vmul.f32 %v1355, %v1749
        %v1757 = vmul.f32 %v1357, %v1749
        %v1758 = vrcp.pop %v1724
        %v1759 = vmul.f32 %v1359, %v1758
        %v1760 = vmul.f32 %v1361, %v1758
        %v1761 = vmul.f32 %v1363, %v1758
        %v1762 = vmul.f32 %v1365, %v1758
        %v1763 = vmul.f32 %v1367, %v1758
        %v1764 = vmul.f32 %v1369, %v1758
        %v1765 = vmul.f32 %v1371, %v1758
        %v1766 = vmul.f32 %v1373, %v1758
        %v1767 = vrcp.pop %v1728
        %v1768 = vmul.f32 %v1375, %v1767
        %v1769 = vmul.f32 %v1377, %v1767
        %v1770 = vmul.f32 %v1379, %v1767
        %v1771 = vmul.f32 %v1381, %v1767
        %v1772 = vmul.f32 %v1383, %v1767
        %v1773 = vmul.f32 %v1385, %v1767
        %v1774 = vmul.f32 %v1387, %v1767
        %v1775 = vmul.f32 %v1389, %v1767
        %v1776 = vrcp.pop %v1732
        %v1777 = vmul.f32 %v1391, %v1776
        %v1778 = vmul.f32 %v1393, %v1776
        %v1779 = vmul.f32 %v1395, %v1776
        %v1780 = vmul.f32 %v1397, %v1776
        %v1781 = vmul.f32 %v1399, %v1776
        %v1782 = vmul.f32 %v1401, %v1776
        %v1783 = vmul.f32 %v1403, %v1776
        %v1784 = vmul.f32 %v1405, %v1776
        %v1785 = vrcp.pop %v1736
        %v1786 = vmul.f32 %v1407, %v1785
        %v1787 = vmul.f32 %v1409, %v1785
        %v1788 = vmul.f32 %v1411, %v1785
        %v1789 = vmul.f32 %v1413, %v1785
        %v1790 = vmul.f32 %v1415, %v1785
        %v1791 = vmul.f32 %v1417, %v1785
        %v1792 = vmul.f32 %v1419, %v1785
        %v1793 = vmul.f32 %v1421, %v1785
        %v1794 = vrcp.pop %v1740
        %v1795 = vmul.f32 %v1423, %v1794
        %v1796 = vmul.f32 %v1425, %v1794
        %v1797 = vmul.f32 %v1427, %v1794
        %v1798 = vmul.f32 %v1429, %v1794
        %v1799 = vmul.f32 %v1431, %v1794
        %v1800 = vmul.f32 %v1433, %v1794
        %v1801 = vmul.f32 %v1435, %v1794
        %v1802 = vmul.f32 %v1437, %v1794
        %v1803 = vrcp.pop %v1744
        %v1804 = vmul.f32 %v1439, %v1803
        %v1805 = vmul.f32 %v1441, %v1803
        %v1806 = vmul.f32 %v1443, %v1803
        %v1807 = vmul.f32 %v1445, %v1803
        %v1808 = vmul.f32 %v1447, %v1803
        %v1809 = vmul.f32 %v1449, %v1803
        %v1810 = vmul.f32 %v1451, %v1803
        %v1811 = vmul.f32 %v1453, %v1803
        %v1812 = vrcp.pop %v1748
        %v1813 = vmul.f32 %v1455, %v1812
        %v1814 = vmul.f32 %v1457, %v1812
        %v1815 = vmul.f32 %v1459, %v1812
        %v1816 = vmul.f32 %v1461, %v1812
        %v1817 = vmul.f32 %v1463, %v1812
        %v1818 = vmul.f32 %v1465, %v1812
        %v1819 = vmul.f32 %v1467, %v1812
        %v1820 = vmul.f32 %v1469, %v1812
        %v1821 = vlaneseq
        %v1822 = vshrl.u32 %v1821, 7
        %v1823 = vsub.s32 0, %v1822
        %v1824 = vrot.slane %v1750, %v1823
        %v1825 = vlaneseq
        %v1826 = vshrl.u32 %v1825, 7
        %v1827 = vsub.s32 0, %v1826
        %v1828 = vrot.slane %v1751, %v1827
        %v1829 = vlaneseq
        %v1830 = vshrl.u32 %v1829, 7
        %v1831 = vsub.s32 0, %v1830
        %v1832 = vrot.slane %v1752, %v1831
        %v1833 = vlaneseq
        %v1834 = vshrl.u32 %v1833, 7
        %v1835 = vsub.s32 0, %v1834
        %v1836 = vrot.slane %v1753, %v1835
        %v1837 = vlaneseq
        %v1838 = vshrl.u32 %v1837, 7
        %v1839 = vsub.s32 0, %v1838
        %v1840 = vrot.slane %v1754, %v1839
        %v1841 = vlaneseq
        %v1842 = vshrl.u32 %v1841, 7
        %v1843 = vsub.s32 0, %v1842
        %v1844 = vrot.slane %v1755, %v1843
        %v1845 = vlaneseq
        %v1846 = vshrl.u32 %v1845, 7
        %v1847 = vsub.s32 0, %v1846
        %v1848 = vrot.slane %v1756, %v1847
        %v1849 = vlaneseq
        %v1850 = vshrl.u32 %v1849, 7
        %v1851 = vsub.s32 0, %v1850
        %v1852 = vrot.slane %v1757, %v1851
        %v1853 = vlaneseq
        %v1854 = vshrl.u32 %v1853, 7
        %v1855 = vsub.s32 0, %v1854
        %v1856 = vrot.slane %v1759, %v1855
        %v1857 = vlaneseq
        %v1858 = vshrl.u32 %v1857, 7
        %v1859 = vsub.s32 0, %v1858
        %v1860 = vrot.slane %v1760, %v1859
        %v1861 = vlaneseq
        %v1862 = vshrl.u32 %v1861, 7
        %v1863 = vsub.s32 0, %v1862
        %v1864 = vrot.slane %v1761, %v1863
        %v1865 = vlaneseq
        %v1866 = vshrl.u32 %v1865, 7
        %v1867 = vsub.s32 0, %v1866
        %v1868 = vrot.slane %v1762, %v1867
        %v1869 = vlaneseq
        %v1870 = vshrl.u32 %v1869, 7
        %v1871 = vsub.s32 0, %v1870
        %v1872 = vrot.slane %v1763, %v1871
        %v1873 = vlaneseq
        %v1874 = vshrl.u32 %v1873, 7
        %v1875 = vsub.s32 0, %v1874
        %v1876 = vrot.slane %v1764, %v1875
        %v1877 = vlaneseq
        %v1878 = vshrl.u32 %v1877, 7
        %v1879 = vsub.s32 0, %v1878
        %v1880 = vrot.slane %v1765, %v1879
        %v1881 = vlaneseq
        %v1882 = vshrl.u32 %v1881, 7
        %v1883 = vsub.s32 0, %v1882
        %v1884 = vrot.slane %v1766, %v1883
        %v1885 = vlaneseq
        %v1886 = vshrl.u32 %v1885, 7
        %v1887 = vsub.s32 0, %v1886
        %v1888 = vrot.slane %v1768, %v1887
        %v1889 = vlaneseq
        %v1890 = vshrl.u32 %v1889, 7
        %v1891 = vsub.s32 0, %v1890
        %v1892 = vrot.slane %v1769, %v1891
        %v1893 = vlaneseq
        %v1894 = vshrl.u32 %v1893, 7
        %v1895 = vsub.s32 0, %v1894
        %v1896 = vrot.slane %v1770, %v1895
        %v1897 = vlaneseq
        %v1898 = vshrl.u32 %v1897, 7
        %v1899 = vsub.s32 0, %v1898
        %v1900 = vrot.slane %v1771, %v1899
        %v1901 = vlaneseq
        %v1902 = vshrl.u32 %v1901, 7
        %v1903 = vsub.s32 0, %v1902
        %v1904 = vrot.slane %v1772, %v1903
        %v1905 = vlaneseq
        %v1906 = vshrl.u32 %v1905, 7
        %v1907 = vsub.s32 0, %v1906
        %v1908 = vrot.slane %v1773, %v1907
        %v1909 = vlaneseq
        %v1910 = vshrl.u32 %v1909, 7
        %v1911 = vsub.s32 0, %v1910
        %v1912 = vrot.slane %v1774, %v1911
        %v1913 = vlaneseq
        %v1914 = vshrl.u32 %v1913, 7
        %v1915 = vsub.s32 0, %v1914
        %v1916 = vrot.slane %v1775, %v1915
        %v1917 = vlaneseq
        %v1918 = vshrl.u32 %v1917, 7
        %v1919 = vsub.s32 0, %v1918
        %v1920 = vrot.slane %v1777, %v1919
        %v1921 = vlaneseq
        %v1922 = vshrl.u32 %v1921, 7
        %v1923 = vsub.s32 0, %v1922
        %v1924 = vrot.slane %v1778, %v1923
        %v1925 = vlaneseq
        %v1926 = vshrl.u32 %v1925, 7
        %v1927 = vsub.s32 0, %v1926
        %v1928 = vrot.slane %v1779, %v1927
        %v1929 = vlaneseq
        %v1930 = vshrl.u32 %v1929, 7
        %v1931 = vsub.s32 0, %v1930
        %v1932 = vrot.slane %v1780, %v1931
        %v1933 = vlaneseq
        %v1934 = vshrl.u32 %v1933, 7
        %v1935 = vsub.s32 0, %v1934
        %v1936 = vrot.slane %v1781, %v1935
        %v1937 = vlaneseq
        %v1938 = vshrl.u32 %v1937, 7
        %v1939 = vsub.s32 0, %v1938
        %v1940 = vrot.slane %v1782, %v1939
        %v1941 = vlaneseq
        %v1942 = vshrl.u32 %v1941, 7
        %v1943 = vsub.s32 0, %v1942
        %v1944 = vrot.slane %v1783, %v1943
        %v1945 = vlaneseq
        %v1946 = vshrl.u32 %v1945, 7
        %v1947 = vsub.s32 0, %v1946
        %v1948 = vrot.slane %v1784, %v1947
        %v1949 = vlaneseq
        %v1950 = vshrl.u32 %v1949, 7
        %v1951 = vsub.s32 0, %v1950
        %v1952 = vrot.slane %v1786, %v1951
        %v1953 = vlaneseq
        %v1954 = vshrl.u32 %v1953, 7
        %v1955 = vsub.s32 0, %v1954
        %v1956 = vrot.slane %v1787, %v1955
        %v1957 = vlaneseq
        %v1958 = vshrl.u32 %v1957, 7
        %v1959 = vsub.s32 0, %v1958
        %v1960 = vrot.slane %v1788, %v1959
        %v1961 = vlaneseq
        %v1962 = vshrl.u32 %v1961, 7
        %v1963 = vsub.s32 0, %v1962
        %v1964 = vrot.slane %v1789, %v1963
        %v1965 = vlaneseq
        %v1966 = vshrl.u32 %v1965, 7
        %v1967 = vsub.s32 0, %v1966
        %v1968 = vrot.slane %v1790, %v1967
        %v1969 = vlaneseq
        %v1970 = vshrl.u32 %v1969, 7
        %v1971 = vsub.s32 0, %v1970
        %v1972 = vrot.slane %v1791, %v1971
        %v1973 = vlaneseq
        %v1974 = vshrl.u32 %v1973, 7
        %v1975 = vsub.s32 0, %v1974
        %v1976 = vrot.slane %v1792, %v1975
        %v1977 = vlaneseq
        %v1978 = vshrl.u32 %v1977, 7
        %v1979 = vsub.s32 0, %v1978
        %v1980 = vrot.slane %v1793, %v1979
        %v1981 = vlaneseq
        %v1982 = vshrl.u32 %v1981, 7
        %v1983 = vsub.s32 0, %v1982
        %v1984 = vrot.slane %v1795, %v1983
        %v1985 = vlaneseq
        %v1986 = vshrl.u32 %v1985, 7
        %v1987 = vsub.s32 0, %v1986
        %v1988 = vrot.slane %v1796, %v1987
        %v1989 = vlaneseq
        %v1990 = vshrl.u32 %v1989, 7
        %v1991 = vsub.s32 0, %v1990
        %v1992 = vrot.slane %v1797, %v1991
        %v1993 = vlaneseq
        %v1994 = vshrl.u32 %v1993, 7
        %v1995 = vsub.s32 0, %v1994
        %v1996 = vrot.slane %v1798, %v1995
        %v1997 = vlaneseq
        %v1998 = vshrl.u32 %v1997, 7
        %v1999 = vsub.s32 0, %v1998
        %v2000 = vrot.slane %v1799, %v1999
        %v2001 = vlaneseq
        %v2002 = vshrl.u32 %v2001, 7
        %v2003 = vsub.s32 0, %v2002
        %v2004 = vrot.slane %v1800, %v2003
        %v2005 = vlaneseq
        %v2006 = vshrl.u32 %v2005, 7
        %v2007 = vsub.s32 0, %v2006
        %v2008 = vrot.slane %v1801, %v2007
        %v2009 = vlaneseq
        %v2010 = vshrl.u32 %v2009, 7
        %v2011 = vsub.s32 0, %v2010
        %v2012 = vrot.slane %v1802, %v2011
        %v2013 = vlaneseq
        %v2014 = vshrl.u32 %v2013, 7
        %v2015 = vsub.s32 0, %v2014
        %v2016 = vrot.slane %v1804, %v2015
        %v2017 = vlaneseq
        %v2018 = vshrl.u32 %v2017, 7
        %v2019 = vsub.s32 0, %v2018
        %v2020 = vrot.slane %v1805, %v2019
        %v2021 = vlaneseq
        %v2022 = vshrl.u32 %v2021, 7
        %v2023 = vsub.s32 0, %v2022
        %v2024 = vrot.slane %v1806, %v2023
        %v2025 = vlaneseq
        %v2026 = vshrl.u32 %v2025, 7
        %v2027 = vsub.s32 0, %v2026
        %v2028 = vrot.slane %v1807, %v2027
        %v2029 = vlaneseq
        %v2030 = vshrl.u32 %v2029, 7
        %v2031 = vsub.s32 0, %v2030
        %v2032 = vrot.slane %v1808, %v2031
        %v2033 = vlaneseq
        %v2034 = vshrl.u32 %v2033, 7
        %v2035 = vsub.s32 0, %v2034
        %v2036 = vrot.slane %v1809, %v2035
        %v2037 = vlaneseq
        %v2038 = vshrl.u32 %v2037, 7
        %v2039 = vsub.s32 0, %v2038
        %v2040 = vrot.slane %v1810, %v2039
        %v2041 = vlaneseq
        %v2042 = vshrl.u32 %v2041, 7
        %v2043 = vsub.s32 0, %v2042
        %v2044 = vrot.slane %v1811, %v2043
        %v2045 = vlaneseq
        %v2046 = vshrl.u32 %v2045, 7
        %v2047 = vsub.s32 0, %v2046
        %v2048 = vrot.slane %v1813, %v2047
        %v2049 = vlaneseq
        %v2050 = vshrl.u32 %v2049, 7
        %v2051 = vsub.s32 0, %v2050
        %v2052 = vrot.slane %v1814, %v2051
        %v2053 = vlaneseq
        %v2054 = vshrl.u32 %v2053, 7
        %v2055 = vsub.s32 0, %v2054
        %v2056 = vrot.slane %v1815, %v2055
        %v2057 = vlaneseq
        %v2058 = vshrl.u32 %v2057, 7
        %v2059 = vsub.s32 0, %v2058
        %v2060 = vrot.slane %v1816, %v2059
        %v2061 = vlaneseq
        %v2062 = vshrl.u32 %v2061, 7
        %v2063 = vsub.s32 0, %v2062
        %v2064 = vrot.slane %v1817, %v2063
        %v2065 = vlaneseq
        %v2066 = vshrl.u32 %v2065, 7
        %v2067 = vsub.s32 0, %v2066
        %v2068 = vrot.slane %v1818, %v2067
        %v2069 = vlaneseq
        %v2070 = vshrl.u32 %v2069, 7
        %v2071 = vsub.s32 0, %v2070
        %v2072 = vrot.slane %v1819, %v2071
        %v2073 = vlaneseq
        %v2074 = vshrl.u32 %v2073, 7
        %v2075 = vsub.s32 0, %v2074
        %v2076 = vrot.slane %v1820, %v2075
        %2077 = vrot.lane.b32.xlu0 %v312, 64
        %v2078 = vpop.permute.xlu0 %2077
        %2079 = vrot.lane.b32.xlu0 %v317, 64
        %v2080 = vpop.permute.xlu0 %2079
        %2081 = vrot.lane.b32.xlu0 %v322, 64
        %v2082 = vpop.permute.xlu0 %2081
        %2083 = vrot.lane.b32.xlu0 %v327, 64
        %v2084 = vpop.permute.xlu0 %2083
        %2085 = vrot.lane.b32.xlu0 %v332, 64
        %v2086 = vpop.permute.xlu0 %2085
        %2087 = vrot.lane.b32.xlu0 %v337, 64
        %v2088 = vpop.permute.xlu0 %2087
        %2089 = vrot.lane.b32.xlu0 %v342, 64
        %v2090 = vpop.permute.xlu0 %2089
        %2091 = vrot.lane.b32.xlu0 %v347, 64
        %v2092 = vpop.permute.xlu0 %2091
        %2093 = vrot.lane.b32.xlu0 %v352, 64
        %v2094 = vpop.permute.xlu0 %2093
        %2095 = vrot.lane.b32.xlu0 %v357, 64
        %v2096 = vpop.permute.xlu0 %2095
        %2097 = vrot.lane.b32.xlu0 %v362, 64
        %v2098 = vpop.permute.xlu0 %2097
        %2099 = vrot.lane.b32.xlu0 %v367, 64
        %v2100 = vpop.permute.xlu0 %2099
        %2101 = vrot.lane.b32.xlu0 %v372, 64
        %v2102 = vpop.permute.xlu0 %2101
        %2103 = vrot.lane.b32.xlu0 %v377, 64
        %v2104 = vpop.permute.xlu0 %2103
        %2105 = vrot.lane.b32.xlu0 %v382, 64
        %v2106 = vpop.permute.xlu0 %2105
        %2107 = vrot.lane.b32.xlu0 %v387, 64
        %v2108 = vpop.permute.xlu0 %2107
        %v2125 = vmul.f32 %v1824, %v2078
        %v2126 = vmul.f32 %v1824, %v2080
        %v2127 = vmul.f32 %v1828, %v2082
        %v2128 = vmul.f32 %v1828, %v2084
        %v2129 = vmul.f32 %v1832, %v2086
        %v2130 = vmul.f32 %v1832, %v2088
        %v2131 = vmul.f32 %v1836, %v2090
        %v2132 = vmul.f32 %v1836, %v2092
        %v2133 = vmul.f32 %v1840, %v2094
        %v2134 = vmul.f32 %v1840, %v2096
        %v2135 = vmul.f32 %v1844, %v2098
        %v2136 = vmul.f32 %v1844, %v2100
        %v2137 = vmul.f32 %v1848, %v2102
        %v2138 = vmul.f32 %v1848, %v2104
        %v2139 = vmul.f32 %v1852, %v2106
        %v2140 = vmul.f32 %v1852, %v2108
        %v2141 = vmul.f32 %v1856, %v2078
        %v2142 = vmul.f32 %v1856, %v2080
        %v2143 = vmul.f32 %v1860, %v2082
        %v2144 = vmul.f32 %v1860, %v2084
        %v2145 = vmul.f32 %v1864, %v2086
        %v2146 = vmul.f32 %v1864, %v2088
        %v2147 = vmul.f32 %v1868, %v2090
        %v2148 = vmul.f32 %v1868, %v2092
        %v2149 = vmul.f32 %v1872, %v2094
        %v2150 = vmul.f32 %v1872, %v2096
        %v2151 = vmul.f32 %v1876, %v2098
        %v2152 = vmul.f32 %v1876, %v2100
        %v2153 = vmul.f32 %v1880, %v2102
        %v2154 = vmul.f32 %v1880, %v2104
        %v2155 = vmul.f32 %v1884, %v2106
        %v2156 = vmul.f32 %v1884, %v2108
        %v2157 = vmul.f32 %v1888, %v2078
        %v2158 = vmul.f32 %v1888, %v2080
        %v2159 = vmul.f32 %v1892, %v2082
        %v2160 = vmul.f32 %v1892, %v2084
        %v2161 = vmul.f32 %v1896, %v2086
        %v2162 = vmul.f32 %v1896, %v2088
        %v2163 = vmul.f32 %v1900, %v2090
        %v2164 = vmul.f32 %v1900, %v2092
        %v2165 = vmul.f32 %v1904, %v2094
        %v2166 = vmul.f32 %v1904, %v2096
        %v2167 = vmul.f32 %v1908, %v2098
        %v2168 = vmul.f32 %v1908, %v2100
        %v2169 = vmul.f32 %v1912, %v2102
        %v2170 = vmul.f32 %v1912, %v2104
        %v2171 = vmul.f32 %v1916, %v2106
        %v2172 = vmul.f32 %v1916, %v2108
        %v2173 = vmul.f32 %v1920, %v2078
        %v2174 = vmul.f32 %v1920, %v2080
        %v2175 = vmul.f32 %v1924, %v2082
        %v2176 = vmul.f32 %v1924, %v2084
        %v2177 = vmul.f32 %v1928, %v2086
        %v2178 = vmul.f32 %v1928, %v2088
        %v2179 = vmul.f32 %v1932, %v2090
        %v2180 = vmul.f32 %v1932, %v2092
        %v2181 = vmul.f32 %v1936, %v2094
        %v2182 = vmul.f32 %v1936, %v2096
        %v2183 = vmul.f32 %v1940, %v2098
        %v2184 = vmul.f32 %v1940, %v2100
        %v2185 = vmul.f32 %v1944, %v2102
        %v2186 = vmul.f32 %v1944, %v2104
        %v2187 = vmul.f32 %v1948, %v2106
        %v2188 = vmul.f32 %v1948, %v2108
        %v2189 = vmul.f32 %v1952, %v2078
        %v2190 = vmul.f32 %v1952, %v2080
        %v2191 = vmul.f32 %v1956, %v2082
        %v2192 = vmul.f32 %v1956, %v2084
        %v2193 = vmul.f32 %v1960, %v2086
        %v2194 = vmul.f32 %v1960, %v2088
        %v2195 = vmul.f32 %v1964, %v2090
        %v2196 = vmul.f32 %v1964, %v2092
        %v2197 = vmul.f32 %v1968, %v2094
        %v2198 = vmul.f32 %v1968, %v2096
        %v2199 = vmul.f32 %v1972, %v2098
        %v2200 = vmul.f32 %v1972, %v2100
        %v2201 = vmul.f32 %v1976, %v2102
        %v2202 = vmul.f32 %v1976, %v2104
        %v2203 = vmul.f32 %v1980, %v2106
        %v2204 = vmul.f32 %v1980, %v2108
        %v2205 = vmul.f32 %v1984, %v2078
        %v2206 = vmul.f32 %v1984, %v2080
        %v2207 = vmul.f32 %v1988, %v2082
        %v2208 = vmul.f32 %v1988, %v2084
        %v2209 = vmul.f32 %v1992, %v2086
        %v2210 = vmul.f32 %v1992, %v2088
        %v2211 = vmul.f32 %v1996, %v2090
        %v2212 = vmul.f32 %v1996, %v2092
        %v2213 = vmul.f32 %v2000, %v2094
        %v2214 = vmul.f32 %v2000, %v2096
        %v2215 = vmul.f32 %v2004, %v2098
        %v2216 = vmul.f32 %v2004, %v2100
        %v2217 = vmul.f32 %v2008, %v2102
        %v2218 = vmul.f32 %v2008, %v2104
        %v2219 = vmul.f32 %v2012, %v2106
        %v2220 = vmul.f32 %v2012, %v2108
        %v2221 = vmul.f32 %v2016, %v2078
        %v2222 = vmul.f32 %v2016, %v2080
        %v2223 = vmul.f32 %v2020, %v2082
        %v2224 = vmul.f32 %v2020, %v2084
        %v2225 = vmul.f32 %v2024, %v2086
        %v2226 = vmul.f32 %v2024, %v2088
        %v2227 = vmul.f32 %v2028, %v2090
        %v2228 = vmul.f32 %v2028, %v2092
        %v2229 = vmul.f32 %v2032, %v2094
        %v2230 = vmul.f32 %v2032, %v2096
        %v2231 = vmul.f32 %v2036, %v2098
        %v2232 = vmul.f32 %v2036, %v2100
        %v2233 = vmul.f32 %v2040, %v2102
        %v2234 = vmul.f32 %v2040, %v2104
        %v2235 = vmul.f32 %v2044, %v2106
        %v2236 = vmul.f32 %v2044, %v2108
        %v2237 = vmul.f32 %v2048, %v2078
        %v2238 = vmul.f32 %v2048, %v2080
        %v2239 = vmul.f32 %v2052, %v2082
        %v2240 = vmul.f32 %v2052, %v2084
        %v2241 = vmul.f32 %v2056, %v2086
        %v2242 = vmul.f32 %v2056, %v2088
        %v2243 = vmul.f32 %v2060, %v2090
        %v2244 = vmul.f32 %v2060, %v2092
        %v2245 = vmul.f32 %v2064, %v2094
        %v2246 = vmul.f32 %v2064, %v2096
        %v2247 = vmul.f32 %v2068, %v2098
        %v2248 = vmul.f32 %v2068, %v2100
        %v2249 = vmul.f32 %v2072, %v2102
        %v2250 = vmul.f32 %v2072, %v2104
        %v2251 = vmul.f32 %v2076, %v2106
        %v2252 = vmul.f32 %v2076, %v2108
        %v2253 = vsel %vm196, %v2125, 0.0
        %v2254 = vsel %vm196, %v2127, 0.0
        %v2255 = vadd.f32 %v2253, %v2254
        %v2256 = vsel %vm196, %v2129, 0.0
        %v2257 = vadd.f32 %v2255, %v2256
        %v2258 = vsel %vm196, %v2131, 0.0
        %v2259 = vadd.f32 %v2257, %v2258
        %v2260 = vsel %vm196, %v2133, 0.0
        %v2261 = vadd.f32 %v2259, %v2260
        %v2262 = vsel %vm196, %v2135, 0.0
        %v2263 = vadd.f32 %v2261, %v2262
        %v2264 = vsel %vm196, %v2137, 0.0
        %v2265 = vadd.f32 %v2263, %v2264
        %v2266 = vsel %vm196, %v2139, 0.0
        %v2267 = vadd.f32 %v2265, %v2266
        %v2268 = vsel %vm196, %v2126, 0.0
        %v2269 = vsel %vm196, %v2128, 0.0
        %v2270 = vadd.f32 %v2268, %v2269
        %v2271 = vsel %vm196, %v2130, 0.0
        %v2272 = vadd.f32 %v2270, %v2271
        %v2273 = vsel %vm196, %v2132, 0.0
        %v2274 = vadd.f32 %v2272, %v2273
        %v2275 = vsel %vm196, %v2134, 0.0
        %v2276 = vadd.f32 %v2274, %v2275
        %v2277 = vsel %vm196, %v2136, 0.0
        %v2278 = vadd.f32 %v2276, %v2277
        %v2279 = vsel %vm196, %v2138, 0.0
        %v2280 = vadd.f32 %v2278, %v2279
        %v2281 = vsel %vm196, %v2140, 0.0
        %v2282 = vadd.f32 %v2280, %v2281
        %v2283 = vsel %vm196, %v2141, 0.0
        %v2284 = vsel %vm196, %v2143, 0.0
        %v2285 = vadd.f32 %v2283, %v2284
        %v2286 = vsel %vm196, %v2145, 0.0
        %v2287 = vadd.f32 %v2285, %v2286
        %v2288 = vsel %vm196, %v2147, 0.0
        %v2289 = vadd.f32 %v2287, %v2288
        %v2290 = vsel %vm196, %v2149, 0.0
        %v2291 = vadd.f32 %v2289, %v2290
        %v2292 = vsel %vm196, %v2151, 0.0
        %v2293 = vadd.f32 %v2291, %v2292
        %v2294 = vsel %vm196, %v2153, 0.0
        %v2295 = vadd.f32 %v2293, %v2294
        %v2296 = vsel %vm196, %v2155, 0.0
        %v2297 = vadd.f32 %v2295, %v2296
        %v2298 = vsel %vm196, %v2142, 0.0
        %v2299 = vsel %vm196, %v2144, 0.0
        %v2300 = vadd.f32 %v2298, %v2299
        %v2301 = vsel %vm196, %v2146, 0.0
        %v2302 = vadd.f32 %v2300, %v2301
        %v2303 = vsel %vm196, %v2148, 0.0
        %v2304 = vadd.f32 %v2302, %v2303
        %v2305 = vsel %vm196, %v2150, 0.0
        %v2306 = vadd.f32 %v2304, %v2305
        %v2307 = vsel %vm196, %v2152, 0.0
        %v2308 = vadd.f32 %v2306, %v2307
        %v2309 = vsel %vm196, %v2154, 0.0
        %v2310 = vadd.f32 %v2308, %v2309
        %v2311 = vsel %vm196, %v2156, 0.0
        %v2312 = vadd.f32 %v2310, %v2311
        %v2313 = vsel %vm196, %v2157, 0.0
        %v2314 = vsel %vm196, %v2159, 0.0
        %v2315 = vadd.f32 %v2313, %v2314
        %v2316 = vsel %vm196, %v2161, 0.0
        %v2317 = vadd.f32 %v2315, %v2316
        %v2318 = vsel %vm196, %v2163, 0.0
        %v2319 = vadd.f32 %v2317, %v2318
        %v2320 = vsel %vm196, %v2165, 0.0
        %v2321 = vadd.f32 %v2319, %v2320
        %v2322 = vsel %vm196, %v2167, 0.0
        %v2323 = vadd.f32 %v2321, %v2322
        %v2324 = vsel %vm196, %v2169, 0.0
        %v2325 = vadd.f32 %v2323, %v2324
        %v2326 = vsel %vm196, %v2171, 0.0
        %v2327 = vadd.f32 %v2325, %v2326
        %v2328 = vsel %vm196, %v2158, 0.0
        %v2329 = vsel %vm196, %v2160, 0.0
        %v2330 = vadd.f32 %v2328, %v2329
        %v2331 = vsel %vm196, %v2162, 0.0
        %v2332 = vadd.f32 %v2330, %v2331
        %v2333 = vsel %vm196, %v2164, 0.0
        %v2334 = vadd.f32 %v2332, %v2333
        %v2335 = vsel %vm196, %v2166, 0.0
        %v2336 = vadd.f32 %v2334, %v2335
        %v2337 = vsel %vm196, %v2168, 0.0
        %v2338 = vadd.f32 %v2336, %v2337
        %v2339 = vsel %vm196, %v2170, 0.0
        %v2340 = vadd.f32 %v2338, %v2339
        %v2341 = vsel %vm196, %v2172, 0.0
        %v2342 = vadd.f32 %v2340, %v2341
        %v2343 = vsel %vm196, %v2173, 0.0
        %v2344 = vsel %vm196, %v2175, 0.0
        %v2345 = vadd.f32 %v2343, %v2344
        %v2346 = vsel %vm196, %v2177, 0.0
        %v2347 = vadd.f32 %v2345, %v2346
        %v2348 = vsel %vm196, %v2179, 0.0
        %v2349 = vadd.f32 %v2347, %v2348
        %v2350 = vsel %vm196, %v2181, 0.0
        %v2351 = vadd.f32 %v2349, %v2350
        %v2352 = vsel %vm196, %v2183, 0.0
        %v2353 = vadd.f32 %v2351, %v2352
        %v2354 = vsel %vm196, %v2185, 0.0
        %v2355 = vadd.f32 %v2353, %v2354
        %v2356 = vsel %vm196, %v2187, 0.0
        %v2357 = vadd.f32 %v2355, %v2356
        %v2358 = vsel %vm196, %v2174, 0.0
        %v2359 = vsel %vm196, %v2176, 0.0
        %v2360 = vadd.f32 %v2358, %v2359
        %v2361 = vsel %vm196, %v2178, 0.0
        %v2362 = vadd.f32 %v2360, %v2361
        %v2363 = vsel %vm196, %v2180, 0.0
        %v2364 = vadd.f32 %v2362, %v2363
        %v2365 = vsel %vm196, %v2182, 0.0
        %v2366 = vadd.f32 %v2364, %v2365
        %v2367 = vsel %vm196, %v2184, 0.0
        %v2368 = vadd.f32 %v2366, %v2367
        %v2369 = vsel %vm196, %v2186, 0.0
        %v2370 = vadd.f32 %v2368, %v2369
        %v2371 = vsel %vm196, %v2188, 0.0
        %v2372 = vadd.f32 %v2370, %v2371
        %v2373 = vsel %vm196, %v2189, 0.0
        %v2374 = vsel %vm196, %v2191, 0.0
        %v2375 = vadd.f32 %v2373, %v2374
        %v2376 = vsel %vm196, %v2193, 0.0
        %v2377 = vadd.f32 %v2375, %v2376
        %v2378 = vsel %vm196, %v2195, 0.0
        %v2379 = vadd.f32 %v2377, %v2378
        %v2380 = vsel %vm196, %v2197, 0.0
        %v2381 = vadd.f32 %v2379, %v2380
        %v2382 = vsel %vm196, %v2199, 0.0
        %v2383 = vadd.f32 %v2381, %v2382
        %v2384 = vsel %vm196, %v2201, 0.0
        %v2385 = vadd.f32 %v2383, %v2384
        %v2386 = vsel %vm196, %v2203, 0.0
        %v2387 = vadd.f32 %v2385, %v2386
        %v2388 = vsel %vm196, %v2190, 0.0
        %v2389 = vsel %vm196, %v2192, 0.0
        %v2390 = vadd.f32 %v2388, %v2389
        %v2391 = vsel %vm196, %v2194, 0.0
        %v2392 = vadd.f32 %v2390, %v2391
        %v2393 = vsel %vm196, %v2196, 0.0
        %v2394 = vadd.f32 %v2392, %v2393
        %v2395 = vsel %vm196, %v2198, 0.0
        %v2396 = vadd.f32 %v2394, %v2395
        %v2397 = vsel %vm196, %v2200, 0.0
        %v2398 = vadd.f32 %v2396, %v2397
        %v2399 = vsel %vm196, %v2202, 0.0
        %v2400 = vadd.f32 %v2398, %v2399
        %v2401 = vsel %vm196, %v2204, 0.0
        %v2402 = vadd.f32 %v2400, %v2401
        %v2403 = vsel %vm196, %v2205, 0.0
        %v2404 = vsel %vm196, %v2207, 0.0
        %v2405 = vadd.f32 %v2403, %v2404
        %v2406 = vsel %vm196, %v2209, 0.0
        %v2407 = vadd.f32 %v2405, %v2406
        %v2408 = vsel %vm196, %v2211, 0.0
        %v2409 = vadd.f32 %v2407, %v2408
        %v2410 = vsel %vm196, %v2213, 0.0
        %v2411 = vadd.f32 %v2409, %v2410
        %v2412 = vsel %vm196, %v2215, 0.0
        %v2413 = vadd.f32 %v2411, %v2412
        %v2414 = vsel %vm196, %v2217, 0.0
        %v2415 = vadd.f32 %v2413, %v2414
        %v2416 = vsel %vm196, %v2219, 0.0
        %v2417 = vadd.f32 %v2415, %v2416
        %v2418 = vsel %vm196, %v2206, 0.0
        %v2419 = vsel %vm196, %v2208, 0.0
        %v2420 = vadd.f32 %v2418, %v2419
        %v2421 = vsel %vm196, %v2210, 0.0
        %v2422 = vadd.f32 %v2420, %v2421
        %v2423 = vsel %vm196, %v2212, 0.0
        %v2424 = vadd.f32 %v2422, %v2423
        %v2425 = vsel %vm196, %v2214, 0.0
        %v2426 = vadd.f32 %v2424, %v2425
        %v2427 = vsel %vm196, %v2216, 0.0
        %v2428 = vadd.f32 %v2426, %v2427
        %v2429 = vsel %vm196, %v2218, 0.0
        %v2430 = vadd.f32 %v2428, %v2429
        %v2431 = vsel %vm196, %v2220, 0.0
        %v2432 = vadd.f32 %v2430, %v2431
        %v2433 = vsel %vm196, %v2221, 0.0
        %v2434 = vsel %vm196, %v2223, 0.0
        %v2435 = vadd.f32 %v2433, %v2434
        %v2436 = vsel %vm196, %v2225, 0.0
        %v2437 = vadd.f32 %v2435, %v2436
        %v2438 = vsel %vm196, %v2227, 0.0
        %v2439 = vadd.f32 %v2437, %v2438
        %v2440 = vsel %vm196, %v2229, 0.0
        %v2441 = vadd.f32 %v2439, %v2440
        %v2442 = vsel %vm196, %v2231, 0.0
        %v2443 = vadd.f32 %v2441, %v2442
        %v2444 = vsel %vm196, %v2233, 0.0
        %v2445 = vadd.f32 %v2443, %v2444
        %v2446 = vsel %vm196, %v2235, 0.0
        %v2447 = vadd.f32 %v2445, %v2446
        %v2448 = vsel %vm196, %v2222, 0.0
        %v2449 = vsel %vm196, %v2224, 0.0
        %v2450 = vadd.f32 %v2448, %v2449
        %v2451 = vsel %vm196, %v2226, 0.0
        %v2452 = vadd.f32 %v2450, %v2451
        %v2453 = vsel %vm196, %v2228, 0.0
        %v2454 = vadd.f32 %v2452, %v2453
        %v2455 = vsel %vm196, %v2230, 0.0
        %v2456 = vadd.f32 %v2454, %v2455
        %v2457 = vsel %vm196, %v2232, 0.0
        %v2458 = vadd.f32 %v2456, %v2457
        %v2459 = vsel %vm196, %v2234, 0.0
        %v2460 = vadd.f32 %v2458, %v2459
        %v2461 = vsel %vm196, %v2236, 0.0
        %v2462 = vadd.f32 %v2460, %v2461
        %v2463 = vsel %vm196, %v2237, 0.0
        %v2464 = vsel %vm196, %v2239, 0.0
        %v2465 = vadd.f32 %v2463, %v2464
        %v2466 = vsel %vm196, %v2241, 0.0
        %v2467 = vadd.f32 %v2465, %v2466
        %v2468 = vsel %vm196, %v2243, 0.0
        %v2469 = vadd.f32 %v2467, %v2468
        %v2470 = vsel %vm196, %v2245, 0.0
        %v2471 = vadd.f32 %v2469, %v2470
        %v2472 = vsel %vm196, %v2247, 0.0
        %v2473 = vadd.f32 %v2471, %v2472
        %v2474 = vsel %vm196, %v2249, 0.0
        %v2475 = vadd.f32 %v2473, %v2474
        %v2476 = vsel %vm196, %v2251, 0.0
        %v2477 = vadd.f32 %v2475, %v2476
        %v2478 = vsel %vm196, %v2238, 0.0
        %v2479 = vsel %vm196, %v2240, 0.0
        %v2480 = vadd.f32 %v2478, %v2479
        %v2481 = vsel %vm196, %v2242, 0.0
        %v2482 = vadd.f32 %v2480, %v2481
        %v2483 = vsel %vm196, %v2244, 0.0
        %v2484 = vadd.f32 %v2482, %v2483
        %v2485 = vsel %vm196, %v2246, 0.0
        %v2486 = vadd.f32 %v2484, %v2485
        %v2487 = vsel %vm196, %v2248, 0.0
        %v2488 = vadd.f32 %v2486, %v2487
        %v2489 = vsel %vm196, %v2250, 0.0
        %v2490 = vadd.f32 %v2488, %v2489
        %v2491 = vsel %vm196, %v2252, 0.0
        %v2492 = vadd.f32 %v2490, %v2491
        %2493 = vxpose.xlu0.b32.start [1/16] %v2267, 128
        %2494 = vxpose.xlu0.b32.cont [2/16] %v2282, 128
        %2495 = vxpose.xlu0.b32.cont [3/16] %v2297, 128
        %2496 = vxpose.xlu0.b32.cont [4/16] %v2312, 128
        %2497 = vxpose.xlu0.b32.cont [5/16] %v2327, 128
        %2498 = vxpose.xlu0.b32.cont [6/16] %v2342, 128
        %2499 = vxpose.xlu0.b32.cont [7/16] %v2357, 128
        %2500 = vxpose.xlu0.b32.cont [8/16] %v2372, 128
        %2501 = vxpose.xlu0.b32.cont [9/16] %v2387, 128
        %2502 = vxpose.xlu0.b32.cont [10/16] %v2402, 128
        %2503 = vxpose.xlu0.b32.cont [11/16] %v2417, 128
        %2504 = vxpose.xlu0.b32.cont [12/16] %v2432, 128
        %2505 = vxpose.xlu0.b32.cont [13/16] %v2447, 128
        %2506 = vxpose.xlu0.b32.cont [14/16] %v2462, 128
        %2507 = vxpose.xlu0.b32.cont [15/16] %v2477, 128
        %2508 = vxpose.xlu0.b32.end [16/16] %v2492, 128
        %v2509 = vpop.trf.xlu0
        %v2510 = vpop.trf.xlu0
        %v2511 = vpop.trf.xlu0
        %v2512 = vpop.trf.xlu0
        %v2513 = vpop.trf.xlu0
        %v2514 = vpop.trf.xlu0
        %v2515 = vpop.trf.xlu0
        %v2516 = vpop.trf.xlu0
        %v2517 = vpop.trf.xlu0
        %v2518 = vpop.trf.xlu0
        %v2519 = vpop.trf.xlu0
        %v2520 = vpop.trf.xlu0
        %v2521 = vpop.trf.xlu0
        %v2522 = vpop.trf.xlu0
        %v2523 = vpop.trf.xlu0
        %v2524 = vpop.trf.xlu0
        %2525 = vst [vmem:[%s163] sm:$0xff] %v2509
        %2526 = vst [vmem:[%s163 + $0x8] sm:$0xff] %v2510
        %2527 = vst [vmem:[%s163 + $0x10] sm:$0xff] %v2511
        %2528 = vst [vmem:[%s163 + $0x18] sm:$0xff] %v2512
        %s2529 = sand.u32 %s93, 1
        %s2530 = scalar_lea.sflag [#allocation3], %s2529
        %s2531 = sand.u32 %s93, 1
        %s2532 = smul.addr %s2531, 32
        %s2533 = scalar_lea.vmem [#allocation2], %s2532
        // Predicated region
        $region33: #{tpu_custom_call.1} parent=31 // pred_check
          %p2534 = pneg %p103
        $region34: #{tpu_custom_call.1} parent=31 // pred_check_branch
          %2536 = sbr.rel (%p2534) target = $region36
        $region35: #{tpu_custom_call.1} parent=31 // pred_region
          %s2538 = ssub.s32 512, 512
          %2539 = vsyncadd %s2530, %s2538
          %s2540 = smul.addr %s17, 4
          %s2541 = smul.addr %s2540, 128
          %s2542 = scalar_lea.hbm %s3, %s2541
          %s2543 = sshll.u32 %s2533, 4
          %s2544 = int_to_ptr.vmem [resolvable:$true] %s2543
          %2549 = dma.vmem_to_hbm [thread:$0]  %s2544, 512, %s2542, %s2530, 128, 128, 8
        $region36: #{tpu_custom_call.1} parent=31 // pred_fallthru
          _
      $region32: #{tpu_custom_call.1} parent=5 // pred_fallthru
        _
      %p2550 = scmp.le.s32.totalorder 2, %s12
      // Predicated region
      $region37: #{tpu_custom_call.1} parent=5 // pred_check
        %p2551 = pneg %p2550
      $region38: #{tpu_custom_call.1} parent=5 // pred_check_branch
        %2553 = sbr.rel (%p2551) target = $region40
      $region39: #{tpu_custom_call.1} parent=5 // pred_region
        %s2554 = ssub.s32 %s12, 2
        // Predicated region
        $region41: #{tpu_custom_call.1} parent=39 // pred_check
          %p2555 = pneg %p109
        $region42: #{tpu_custom_call.1} parent=39 // pred_check_branch
          %2557 = sbr.rel (%p2555) target = $region44
        $region43: #{tpu_custom_call.1} parent=39 // pred_region
          %s2558 = sand.u32 %s94, 1
          %s2559 = scalar_lea.sflag [#allocation3], %s2558
          %s2560 = sand.u32 %s94, 1
          %s2561 = smul.addr %s2560, 32
          %s2562 = scalar_lea.vmem [#allocation2], %s2561
          %2563 = dma.done %s2559, 512
        $region44: #{tpu_custom_call.1} parent=39 // pred_fallthru
          _
      $region40: #{tpu_custom_call.1} parent=5 // pred_fallthru
        _
    $region6: #{tpu_custom_call.1} parent=1 // loop_footer
      %s16 = sadd.s32 1, %s12
    $region7: #{tpu_custom_call.1} parent=1 // loop_footer_branch
      %11 = sbr.rel target = $region3
    $region8: #{tpu_custom_call.1} parent=1 // loop_exit
      _
    %2564 = vsyncpa [#allocation3], 1
    %s2565 = scalar_lea.sflag [#allocation3], 1
    %2566 = vsyncpa %s2565, 1

</llo_original>
